<compile_context>
chip_gen: v7x
topology: tpu7x:2x2x1
jax: 0.10.0
libtpu: 0.0.40
codegen_flags: <defaults>
</compile_context>

<pallas_src>
import functools

import jax
import jax.numpy as jnp
import numpy as np
from jax.experimental import pallas as pl
from jax.experimental.pallas import tpu as pltpu


def _silu(x):
    return x * jax.nn.sigmoid(x)


def _round_up(v, m):
    return ((v + m - 1) // m) * m


def bottleneck_kernel(x_hbm, w1_ref, b1_ref, w2_ref, b2_ref, o_ref,
                      xband_ref, dma_sem, zpad_ref,
                      *, H, W, TH, add, compute_dtype):
    # x_hbm   : (N*(H+2)*W, C1p) flattened x, 1 zero row pad top/bottom, in HBM
    # w1_ref  : (C1p, C_p)       b1_ref: (1, C_p)   [f32]
    # w2_ref  : (3, 3*C_p, C2p)  b2_ref: (1, C2p)   [f32]
    # o_ref   : (TH*W, C2p) output row-band block
    # xband_ref: VMEM ((TH+2)*W, C1p)  dma_sem: DMA semaphore
    # zpad_ref : VMEM ((TH+2)*W, 3*C_p) haloed im2col buffer (compute dtype)
    n = pl.program_id(0)
    b = pl.program_id(1)
    nbands = pl.num_programs(1)
    c_p = w1_ref.shape[-1]
    BW = (TH + 2) * W          # haloed band rows
    OW = TH * W                # output rows per band

    # ---- fetch the haloed input band (TH + 2 rows) from HBM ----
    row0 = (n * (H + 2) + b * TH) * W
    cp = pltpu.make_async_copy(x_hbm.at[pl.ds(row0, BW), :], xband_ref, dma_sem)
    cp.start()
    cp.wait()
    # TODO(synk): double-buffer xband and prefetch the next band's rows.

    # ---- cv1: 1x1 conv + folded BN + SiLU (single MXU dot, f32 accum) ----
    y1 = jnp.dot(xband_ref[...].astype(compute_dtype), w1_ref[...],
                 preferred_element_type=jnp.float32)           # (BW, C_p)
    y1 = _silu(y1 + b1_ref[...])                               # f32

    # ---- im2col along W (dx = -1/0/+1) via XLU roll + (BW,1) edge masks ----
    # A +/-1 roll over the flattened rows is the W-shift within an image row;
    # the wrap-around rows are exactly the ones the conv-padding mask zeroes.
    w_of_r = jax.lax.broadcasted_iota(jnp.int32, (BW, 1), 0) % W
    y1_m1 = jnp.where(w_of_r == 0, 0.0, pltpu.roll(y1, shift=1, axis=0))
    y1_p1 = jnp.where(w_of_r == W - 1, 0.0, pltpu.roll(y1, shift=BW - 1, axis=0))

    # Direct lane-column slab stores (no concat temporary).
    zpad_ref[:, 0:c_p] = y1_m1.astype(zpad_ref.dtype)
    zpad_ref[:, c_p:2 * c_p] = y1.astype(zpad_ref.dtype)
    zpad_ref[:, 2 * c_p:3 * c_p] = y1_p1.astype(zpad_ref.dtype)

    # Conv zero padding applies to cv1's *output*: the halo row at the image
    # top/bottom must be zero (not cv1 of a zero row).  Interior rows of zpad
    # are fully overwritten every grid step, so only the edge bands need this.
    @pl.when(b == 0)
    def _():
        zpad_ref[0:W, :] = jnp.zeros((W, 3 * c_p), zpad_ref.dtype)

    @pl.when(b == nbands - 1)
    def _():
        zpad_ref[(TH + 1) * W:(TH + 2) * W, :] = jnp.zeros(
            (W, 3 * c_p), zpad_ref.dtype)

    # ---- cv2: three K-fat dots (one per dy); acc initialised by dy=0 ----
    acc = jnp.dot(zpad_ref[0:OW, :], w2_ref[0],
                  preferred_element_type=jnp.float32)
    acc = acc + jnp.dot(zpad_ref[W:W + OW, :], w2_ref[1],
                        preferred_element_type=jnp.float32)
    acc = acc + jnp.dot(zpad_ref[2 * W:2 * W + OW, :], w2_ref[2],
                        preferred_element_type=jnp.float32)
    y2 = _silu(acc + b2_ref[...])                              # (OW, C2p) f32

    if add:  # residual read deferred to the end (short live range)
        y2 = y2 + xband_ref[W:(TH + 1) * W, :].astype(jnp.float32)

    o_ref[...] = y2.astype(o_ref.dtype)


def _pick_band_rows(H, W, c1p, c_p, c2p, x_bytes, cd_bytes,
                    budget_bytes=8 << 20):
    # Largest divisor of H whose per-band activation footprint fits the budget.
    def footprint(th):
        bw = (th + 2) * W
        return (bw * c1p * x_bytes              # xband scratch
                + bw * 3 * c_p * cd_bytes       # zpad scratch
                + 3 * bw * c_p * 4              # y1 + rolled f32 temps
                + 2 * th * W * c2p * 4)         # acc + y2 temps
    divisors = [d for d in range(1, H + 1) if H % d == 0]
    fitting = [d for d in divisors if footprint(d) <= budget_bytes]
    th = max(fitting) if fitting else 1
    # TODO(synk): also tile along W (1-col halo) when even one row is too big.
    if th == H and H % 2 == 0:
        th = H // 2   # >=2 grid steps per image keeps both v7x TCs busy at N=1
    return th


def bottleneck_pallas(x_nhwc, w1f, b1f, w2f, b2f, *, add,
                      compute_dtype=jnp.bfloat16):
    N, H, W, c1 = x_nhwc.shape
    c_ = w1f.shape[1]
    c2 = w2f.shape[-1]
    assert w2f.shape == (3, 3, c_, c2)

    # Lane-dense MXU / vst: pad ALL channel dims (incl. hidden c_) to 128.
    c1p = _round_up(c1, 128)
    c_p = _round_up(c_, 128)
    c2p = _round_up(c2, 128)
    if add:
        assert c1 == c2, "shortcut add requires c1 == c2"

    x_bytes = jnp.dtype(x_nhwc.dtype).itemsize
    cd_bytes = jnp.dtype(compute_dtype).itemsize
    TH = _pick_band_rows(H, W, c1p, c_p, c2p, x_bytes, cd_bytes)
    NB = H // TH
    BW = (TH + 2) * W
    OW = TH * W

    # H zero-pad (1 row top/bottom) + channel pad, flattened to rows x lanes
    # so the kernel never reshapes and all loads/stores are lane-dense.
    x_p = jnp.pad(x_nhwc, ((0, 0), (1, 1), (0, 0), (0, c1p - c1)))
    x_flat = x_p.reshape(N * (H + 2) * W, c1p)

    w1p = jnp.pad(w1f, ((0, c1p - c1), (0, c_p - c_))).astype(compute_dtype)
    b1p = jnp.pad(b1f, ((0, 0), (0, c_p - c_))).astype(jnp.float32)
    w2p = jnp.pad(w2f, ((0, 0), (0, 0), (0, c_p - c_), (0, c2p - c2)))
    w2p = w2p.reshape(3, 3 * c_p, c2p).astype(compute_dtype)
    b2p = jnp.pad(b2f, ((0, 0), (0, c2p - c2))).astype(jnp.float32)

    # Explicit VMEM budget: double-buffered blocks + scratch + temporaries.
    est = (2 * (w1p.size * cd_bytes + b1p.size * 4 + w2p.size * cd_bytes
                + b2p.size * 4 + OW * c2p * x_bytes)
           + BW * c1p * x_bytes + BW * 3 * c_p * cd_bytes
           + 3 * BW * c_p * 4 + 2 * OW * c2p * 4)
    vmem_limit = int(min(max(2 * est, 32 << 20), 64 << 20))

    kern = functools.partial(bottleneck_kernel, H=H, W=W, TH=TH, add=add,
                             compute_dtype=compute_dtype)
    # TODO(synk): pipeline_mode=pl.Buffered(1) on the constant-index weights.
    out = pl.pallas_call(
        kern,
        out_shape=jax.ShapeDtypeStruct((N * H * W, c2p), x_nhwc.dtype),
        grid_spec=pltpu.PrefetchScalarGridSpec(
            num_scalar_prefetch=0,
            grid=(N, NB),
            in_specs=[
                pl.BlockSpec(memory_space=pl.ANY),                # x in HBM
                pl.BlockSpec((c1p, c_p), lambda n, b: (0, 0)),
                pl.BlockSpec((1, c_p), lambda n, b: (0, 0)),
                pl.BlockSpec((3, 3 * c_p, c2p), lambda n, b: (0, 0, 0)),
                pl.BlockSpec((1, c2p), lambda n, b: (0, 0)),
            ],
            out_specs=pl.BlockSpec((OW, c2p), lambda n, b: (n * NB + b, 0)),
            scratch_shapes=[
                pltpu.VMEM((BW, c1p), x_nhwc.dtype),
                pltpu.SemaphoreType.DMA(()),
                pltpu.VMEM((BW, 3 * c_p), compute_dtype),
            ],
        ),
        compiler_params=pltpu.CompilerParams(
            dimension_semantics=("parallel", "parallel"),
            vmem_limit_bytes=vmem_limit),
    )(x_flat, w1p, b1p, w2p, b2p)
    return out.reshape(N, H, W, c2p)[..., :c2]


# ---------------- parameter construction (deterministic) ----------------

def make_params(key, c1, c2, e=0.5):
    c_ = int(c2 * e)
    ks = jax.random.split(key, 10)
    p = {
        # conv weights, PyTorch layout (out, in, kh, kw)
        "w1": jax.random.normal(ks[0], (c_, c1, 1, 1), jnp.float32) * 0.2,
        "w2": jax.random.normal(ks[1], (c2, c_, 3, 3), jnp.float32) * 0.2,
        # BN1
        "g1": 1.0 + 0.1 * jax.random.normal(ks[2], (c_,), jnp.float32),
        "be1": 0.1 * jax.random.normal(ks[3], (c_,), jnp.float32),
        "mu1": 0.1 * jax.random.normal(ks[4], (c_,), jnp.float32),
        "v1": 1.0 + jnp.abs(jax.random.normal(ks[5], (c_,), jnp.float32)) * 0.1,
        # BN2
        "g2": 1.0 + 0.1 * jax.random.normal(ks[6], (c2,), jnp.float32),
        "be2": 0.1 * jax.random.normal(ks[7], (c2,), jnp.float32),
        "mu2": 0.1 * jax.random.normal(ks[8], (c2,), jnp.float32),
        "v2": 1.0 + jnp.abs(jax.random.normal(ks[9], (c2,), jnp.float32)) * 0.1,
    }
    return p


def fold_params(p, eps=1e-5):
    # Fold eval-mode BatchNorm into the conv weights (per-output-channel).
    s1 = p["g1"] / jnp.sqrt(p["v1"] + eps)
    s2 = p["g2"] / jnp.sqrt(p["v2"] + eps)
    # 1x1: (c_, c1, 1, 1) -> (c1, c_), scaled per output channel
    w1f = jnp.transpose(p["w1"][:, :, 0, 0], (1, 0)) * s1[None, :]
    b1f = (p["be1"] - p["mu1"] * s1)[None, :]
    # 3x3: (c2, c_, 3, 3) -> (ky, kx, c_, c2); wrapper pads c_/c2 and folds
    # (kx, c_pad) into the K dim.
    w2f = jnp.transpose(p["w2"], (2, 3, 1, 0)) * s2[None, None, None, :]
    b2f = (p["be2"] - p["mu2"] * s2)[None, :]
    return w1f, b1f, w2f, b2f


# ---------------- pure-JAX reference (for verification) ----------------

def conv_bn_silu_ref(x_nhwc, w_pt, gamma, beta, mu, var, pad, eps=1e-5):
    w = jnp.transpose(w_pt, (2, 3, 1, 0))  # HWIO
    y = jax.lax.conv_general_dilated(
        x_nhwc, w, window_strides=(1, 1),
        padding=[(pad, pad), (pad, pad)],
        dimension_numbers=("NHWC", "HWIO", "NHWC"))
    scale = gamma / jnp.sqrt(var + eps)
    return _silu(y * scale + (beta - mu * scale))


def bottleneck_ref(x_nhwc, p, add):
    y = conv_bn_silu_ref(x_nhwc, p["w1"], p["g1"], p["be1"], p["mu1"], p["v1"], 0)
    y = conv_bn_silu_ref(y, p["w2"], p["g2"], p["be2"], p["mu2"], p["v2"], 1)
    return x_nhwc + y if add else y


if __name__ == "__main__":
    N, C, H, W = 2, 4, 16, 16          # c1 == c2 == 4  ->  shortcut add
    c1 = c2 = C
    shortcut = True
    add = shortcut and (c1 == c2)

    key = jax.random.PRNGKey(0)
    kx, kp = jax.random.split(key)
    x_nchw = jax.random.normal(kx, (N, C, H, W), jnp.float32)   # PyTorch layout
    x_nhwc = jnp.transpose(x_nchw, (0, 2, 3, 1))                # kernel layout

    params = make_params(kp, c1, c2, e=0.5)
    w1f, b1f, w2f, b2f = fold_params(params)

    out_nhwc = bottleneck_pallas(x_nhwc, w1f, b1f, w2f, b2f, add=add)
    out_nhwc = jax.block_until_ready(out_nhwc)

    ref_nhwc = bottleneck_ref(x_nhwc, params, add)
    # bf16 compute (f32 accumulation) -> looser tolerances than pure f32.
    np.testing.assert_allclose(np.asarray(out_nhwc), np.asarray(ref_nhwc),
                               rtol=3e-2, atol=3e-2)

    # back to NCHW to match the PyTorch output convention
    out_nchw = jnp.transpose(out_nhwc, (0, 3, 1, 2))
    assert out_nchw.shape == (N, c2, H, W)

    print("KERNEL_OK")
</pallas_src>

<mosaic_0001>
module attributes {stable_mosaic.version = 11 : i64} {
  func.func @bottleneck_kernel(%arg0: i32, %arg1: i32, %arg2: memref<576x128xf32, #tpu.memory_space<any>>, %arg3: memref<128x128xbf16, #tpu.memory_space<vmem>>, %arg4: memref<1x128xf32, #tpu.memory_space<vmem>>, %arg5: memref<3x384x128xbf16, #tpu.memory_space<vmem>>, %arg6: memref<1x128xf32, #tpu.memory_space<vmem>>, %arg7: memref<128x128xf32, #tpu.memory_space<vmem>>, %arg8: memref<160x128xf32, #tpu.memory_space<vmem>>, %arg9: memref<!tpu.dma_semaphore, #tpu.memory_space<semaphore_mem>>, %arg10: memref<160x384xbf16, #tpu.memory_space<vmem>>) attributes {dimension_semantics = [#tpu.dimension_semantics<parallel>, #tpu.dimension_semantics<parallel>], iteration_bounds = array<i64: 2, 2>, scalar_prefetch = 0 : i64, scratch_operands = 3 : i64, tpu.core_type = #tpu.core_type<tc>, window_params = [{}, {pipeline_mode = #tpu.pipeline_mode<synchronous>, transform_indices = @transform_1, window_bounds = array<i64: 128, 128>}, {pipeline_mode = #tpu.pipeline_mode<synchronous>, transform_indices = @transform_2, window_bounds = array<i64: 1, 128>}, {pipeline_mode = #tpu.pipeline_mode<synchronous>, transform_indices = @transform_3, window_bounds = array<i64: 3, 384, 128>}, {pipeline_mode = #tpu.pipeline_mode<synchronous>, transform_indices = @transform_4, window_bounds = array<i64: 1, 128>}, {transform_indices = @transform_5, window_bounds = array<i64: 128, 128>}]} {
    %c18_i32 = arith.constant 18 : i32
    %0 = arith.muli %arg0, %c18_i32 : i32
    %c8_i32 = arith.constant 8 : i32
    %1 = arith.muli %arg1, %c8_i32 : i32
    %2 = arith.addi %0, %1 : i32
    %c16_i32 = arith.constant 16 : i32
    %3 = arith.muli %2, %c16_i32 : i32
    %c0_i32 = arith.constant 0 : i32
    %4 = tpu.memref_slice %arg2[%3, %c0_i32] : memref<576x128xf32, #tpu.memory_space<any>> -> memref<160x128xf32, #tpu.memory_space<any>>
    tpu.enqueue_dma source(%4 : memref<160x128xf32, #tpu.memory_space<any>>) target(%arg8 : memref<160x128xf32, #tpu.memory_space<vmem>>) target_semaphore(%arg9 : memref<!tpu.dma_semaphore, #tpu.memory_space<semaphore_mem>>)
    %c0_i32_0 = arith.constant 0 : i32
    %5 = tpu.memref_slice %arg2[%3, %c0_i32_0] : memref<576x128xf32, #tpu.memory_space<any>> -> memref<160x128xf32, #tpu.memory_space<any>>
    tpu.wait_dma2 semaphore(%arg9 : memref<!tpu.dma_semaphore, #tpu.memory_space<semaphore_mem>>) src(%5 : memref<160x128xf32, #tpu.memory_space<any>>) dst(%arg8 : memref<160x128xf32, #tpu.memory_space<vmem>>)
    %c0 = arith.constant 0 : index
    %c0_1 = arith.constant 0 : index
    %6 = vector.load %arg8[%c0, %c0_1] : memref<160x128xf32, #tpu.memory_space<vmem>>, vector<160x128xf32>
    %7 = arith.truncf %6 : vector<160x128xf32> to vector<160x128xbf16>
    %c0_2 = arith.constant 0 : index
    %c0_3 = arith.constant 0 : index
    %8 = vector.load %arg3[%c0_2, %c0_3] : memref<128x128xbf16, #tpu.memory_space<vmem>>, vector<128x128xbf16>
    %cst = arith.constant dense<0.000000e+00> : vector<160x128xf32>
    %9 = tpu.matmul %7, %8, %cst {dimension_numbers = #tpu.dot_dimension_numbers<[1], [0], [0], [1], [0, 0, 1, 1], [], []>} : vector<160x128xbf16>, vector<128x128xbf16>, vector<160x128xf32> -> vector<160x128xf32>
    %c0_4 = arith.constant 0 : index
    %c0_5 = arith.constant 0 : index
    %10 = vector.load %arg4[%c0_4, %c0_5] : memref<1x128xf32, #tpu.memory_space<vmem>>, vector<1x128xf32>
    %11 = vector.broadcast %10 : vector<1x128xf32> to vector<160x128xf32>
    %12 = arith.addf %9, %11 : vector<160x128xf32>
    %13 = arith.negf %12 : vector<160x128xf32>
    %14 = math.exp %13 : vector<160x128xf32>
    %cst_6 = arith.constant 1.000000e+00 : f32
    %15 = vector.broadcast %cst_6 : f32 to vector<160x128xf32>
    %16 = arith.addf %15, %14 : vector<160x128xf32>
    %17 = arith.divf %15, %16 : vector<160x128xf32>
    %18 = arith.mulf %12, %17 : vector<160x128xf32>
    %19 = tpu.iota {dimensions = array<i32: 0>} : vector<160x1xi32>
    %c16_i32_7 = arith.constant 16 : i32
    %c0_i32_8 = arith.constant 0 : i32
    %20 = arith.cmpi eq, %c16_i32_7, %c0_i32_8 : i32
    %c1_i32 = arith.constant 1 : i32
    %21 = arith.select %20, %c1_i32, %c16_i32_7 : i32
    %22 = vector.broadcast %21 : i32 to vector<160x1xi32>
    %23 = arith.remsi %19, %22 : vector<160x1xi32>
    %c0_i32_9 = arith.constant 0 : i32
    %24 = vector.broadcast %c0_i32_9 : i32 to vector<160x1xi32>
    %25 = arith.cmpi ne, %23, %24 : vector<160x1xi32>
    %c0_i32_10 = arith.constant 0 : i32
    %26 = vector.broadcast %c0_i32_10 : i32 to vector<160x1xi32>
    %27 = arith.cmpi slt, %23, %26 : vector<160x1xi32>
    %c0_i32_11 = arith.constant 0 : i32
    %28 = arith.cmpi slt, %21, %c0_i32_11 : i32
    %29 = vector.broadcast %28 : i1 to vector<160x1xi1>
    %30 = vector.broadcast %29 : vector<160x1xi1> to vector<160x1xi1>
    %31 = arith.xori %27, %30 : vector<160x1xi1>
    %32 = arith.andi %31, %25 : vector<160x1xi1>
    %33 = vector.broadcast %21 : i32 to vector<160x1xi32>
    %34 = arith.addi %23, %33 : vector<160x1xi32>
    %35 = arith.select %32, %34, %23 : vector<160x1xi1>, vector<160x1xi32>
    %c0_i32_12 = arith.constant 0 : i32
    %36 = vector.broadcast %c0_i32_12 : i32 to vector<160x1xi32>
    %37 = arith.cmpi eq, %35, %36 : vector<160x1xi32>
    %c1_i32_13 = arith.constant 1 : i32
    %38 = tpu.dynamic_rotate %18 by %c1_i32_13 dim 0 : vector<160x128xf32>, i32 -> vector<160x128xf32>
    %cst_14 = arith.constant 0.000000e+00 : f32
    %39 = vector.shape_cast %37 : vector<160x1xi1> to vector<160x1xi1>
    %40 = vector.broadcast %39 : vector<160x1xi1> to vector<160x128xi1>
    %41 = vector.broadcast %cst_14 : f32 to vector<160x128xf32>
    %42 = arith.select %40, %41, %38 : vector<160x128xi1>, vector<160x128xf32>
    %c15_i32 = arith.constant 15 : i32
    %43 = vector.broadcast %c15_i32 : i32 to vector<160x1xi32>
    %44 = arith.cmpi eq, %35, %43 : vector<160x1xi32>
    %c159_i32 = arith.constant 159 : i32
    %45 = tpu.dynamic_rotate %18 by %c159_i32 dim 0 : vector<160x128xf32>, i32 -> vector<160x128xf32>
    %cst_15 = arith.constant 0.000000e+00 : f32
    %46 = vector.shape_cast %44 : vector<160x1xi1> to vector<160x1xi1>
    %47 = vector.broadcast %46 : vector<160x1xi1> to vector<160x128xi1>
    %48 = vector.broadcast %cst_15 : f32 to vector<160x128xf32>
    %49 = arith.select %47, %48, %45 : vector<160x128xi1>, vector<160x128xf32>
    %50 = arith.truncf %42 : vector<160x128xf32> to vector<160x128xbf16>
    %c0_16 = arith.constant 0 : index
    %c0_17 = arith.constant 0 : index
    %51 = vector.load %arg10[%c0_16, %c0_17] : memref<160x384xbf16, #tpu.memory_space<vmem>>, vector<160x128xbf16>
    tpu.vector_store %arg10[%c0_16, %c0_17], %50 {strides = array<i32>} : memref<160x384xbf16, #tpu.memory_space<vmem>>, vector<160x128xbf16>,
    %52 = arith.truncf %18 : vector<160x128xf32> to vector<160x128xbf16>
    %c0_18 = arith.constant 0 : index
    %c128 = arith.constant 128 : index
    %53 = vector.load %arg10[%c0_18, %c128] : memref<160x384xbf16, #tpu.memory_space<vmem>>, vector<160x128xbf16>
    tpu.vector_store %arg10[%c0_18, %c128], %52 {strides = array<i32>} : memref<160x384xbf16, #tpu.memory_space<vmem>>, vector<160x128xbf16>,
    %54 = arith.truncf %49 : vector<160x128xf32> to vector<160x128xbf16>
    %c0_19 = arith.constant 0 : index
    %c256 = arith.constant 256 : index
    %55 = vector.load %arg10[%c0_19, %c256] : memref<160x384xbf16, #tpu.memory_space<vmem>>, vector<160x128xbf16>
    tpu.vector_store %arg10[%c0_19, %c256], %54 {strides = array<i32>} : memref<160x384xbf16, #tpu.memory_space<vmem>>, vector<160x128xbf16>,
    %c0_i32_20 = arith.constant 0 : i32
    %56 = arith.cmpi eq, %arg1, %c0_i32_20 : i32
    %57 = arith.extui %56 : i1 to i32
    %c0_i32_21 = arith.constant 0 : i32
    %58 = arith.cmpi ne, %57, %c0_i32_21 : i32
    scf.if %58 {
      %cst_45 = arith.constant 0.000000e+00 : bf16
      %88 = vector.broadcast %cst_45 : bf16 to vector<16x384xbf16>
      %c0_46 = arith.constant 0 : index
      %c0_47 = arith.constant 0 : index
      %89 = vector.load %arg10[%c0_46, %c0_47] : memref<160x384xbf16, #tpu.memory_space<vmem>>, vector<16x384xbf16>
      tpu.vector_store %arg10[%c0_46, %c0_47], %88 {strides = array<i32>} : memref<160x384xbf16, #tpu.memory_space<vmem>>, vector<16x384xbf16>,
    } else {
    }
    %c1_i32_22 = arith.constant 1 : i32
    %59 = arith.cmpi eq, %arg1, %c1_i32_22 : i32
    %60 = arith.extui %59 : i1 to i32
    %c0_i32_23 = arith.constant 0 : i32
    %61 = arith.cmpi ne, %60, %c0_i32_23 : i32
    scf.if %61 {
      %cst_45 = arith.constant 0.000000e+00 : bf16
      %88 = vector.broadcast %cst_45 : bf16 to vector<16x384xbf16>
      %c144 = arith.constant 144 : index
      %c0_46 = arith.constant 0 : index
      %89 = vector.load %arg10[%c144, %c0_46] : memref<160x384xbf16, #tpu.memory_space<vmem>>, vector<16x384xbf16>
      tpu.vector_store %arg10[%c144, %c0_46], %88 {strides = array<i32>} : memref<160x384xbf16, #tpu.memory_space<vmem>>, vector<16x384xbf16>,
    } else {
    }
    %c0_24 = arith.constant 0 : index
    %c0_25 = arith.constant 0 : index
    %62 = vector.load %arg10[%c0_24, %c0_25] : memref<160x384xbf16, #tpu.memory_space<vmem>>, vector<128x384xbf16>
    %c0_26 = arith.constant 0 : index
    %c0_27 = arith.constant 0 : index
    %c0_28 = arith.constant 0 : index
    %63 = vector.load %arg5[%c0_26, %c0_27, %c0_28] : memref<3x384x128xbf16, #tpu.memory_space<vmem>>, vector<1x384x128xbf16>
    %64 = vector.shape_cast %63 : vector<1x384x128xbf16> to vector<384x128xbf16>
    %cst_29 = arith.constant dense<0.000000e+00> : vector<128x128xf32>
    %65 = tpu.matmul %62, %64, %cst_29 {dimension_numbers = #tpu.dot_dimension_numbers<[1], [0], [0], [1], [0, 0, 1, 1], [], []>} : vector<128x384xbf16>, vector<384x128xbf16>, vector<128x128xf32> -> vector<128x128xf32>
    %c16 = arith.constant 16 : index
    %c0_30 = arith.constant 0 : index
    %66 = vector.load %arg10[%c16, %c0_30] : memref<160x384xbf16, #tpu.memory_space<vmem>>, vector<128x384xbf16>
    %c1 = arith.constant 1 : index
    %c0_31 = arith.constant 0 : index
    %c0_32 = arith.constant 0 : index
    %67 = vector.load %arg5[%c1, %c0_31, %c0_32] : memref<3x384x128xbf16, #tpu.memory_space<vmem>>, vector<1x384x128xbf16>
    %68 = vector.shape_cast %67 : vector<1x384x128xbf16> to vector<384x128xbf16>
    %cst_33 = arith.constant dense<0.000000e+00> : vector<128x128xf32>
    %69 = tpu.matmul %66, %68, %cst_33 {dimension_numbers = #tpu.dot_dimension_numbers<[1], [0], [0], [1], [0, 0, 1, 1], [], []>} : vector<128x384xbf16>, vector<384x128xbf16>, vector<128x128xf32> -> vector<128x128xf32>
    %70 = arith.addf %65, %69 : vector<128x128xf32>
    %c32 = arith.constant 32 : index
    %c0_34 = arith.constant 0 : index
    %71 = vector.load %arg10[%c32, %c0_34] : memref<160x384xbf16, #tpu.memory_space<vmem>>, vector<128x384xbf16>
    %c2 = arith.constant 2 : index
    %c0_35 = arith.constant 0 : index
    %c0_36 = arith.constant 0 : index
    %72 = vector.load %arg5[%c2, %c0_35, %c0_36] : memref<3x384x128xbf16, #tpu.memory_space<vmem>>, vector<1x384x128xbf16>
    %73 = vector.shape_cast %72 : vector<1x384x128xbf16> to vector<384x128xbf16>
    %cst_37 = arith.constant dense<0.000000e+00> : vector<128x128xf32>
    %74 = tpu.matmul %71, %73, %cst_37 {dimension_numbers = #tpu.dot_dimension_numbers<[1], [0], [0], [1], [0, 0, 1, 1], [], []>} : vector<128x384xbf16>, vector<384x128xbf16>, vector<128x128xf32> -> vector<128x128xf32>
    %75 = arith.addf %70, %74 : vector<128x128xf32>
    %c0_38 = arith.constant 0 : index
    %c0_39 = arith.constant 0 : index
    %76 = vector.load %arg6[%c0_38, %c0_39] : memref<1x128xf32, #tpu.memory_space<vmem>>, vector<1x128xf32>
    %77 = vector.broadcast %76 : vector<1x128xf32> to vector<128x128xf32>
    %78 = arith.addf %75, %77 : vector<128x128xf32>
    %79 = arith.negf %78 : vector<128x128xf32>
    %80 = math.exp %79 : vector<128x128xf32>
    %cst_40 = arith.constant 1.000000e+00 : f32
    %81 = vector.broadcast %cst_40 : f32 to vector<128x128xf32>
    %82 = arith.addf %81, %80 : vector<128x128xf32>
    %83 = arith.divf %81, %82 : vector<128x128xf32>
    %84 = arith.mulf %78, %83 : vector<128x128xf32>
    %c16_41 = arith.constant 16 : index
    %c0_42 = arith.constant 0 : index
    %85 = vector.load %arg8[%c16_41, %c0_42] : memref<160x128xf32, #tpu.memory_space<vmem>>, vector<128x128xf32>
    %86 = arith.addf %84, %85 : vector<128x128xf32>
    %c0_43 = arith.constant 0 : index
    %c0_44 = arith.constant 0 : index
    %87 = vector.load %arg7[%c0_43, %c0_44] : memref<128x128xf32, #tpu.memory_space<vmem>>, vector<128x128xf32>
    tpu.vector_store %arg7[%c0_43, %c0_44], %86 {strides = array<i32>} : memref<128x128xf32, #tpu.memory_space<vmem>>, vector<128x128xf32>,
    return
  }
  func.func @transform_1(%arg0: i32, %arg1: i32) -> (i32, i32) {
    %c0_i32 = arith.constant 0 : i32
    %c0_i32_0 = arith.constant 0 : i32
    %c0_i32_1 = arith.constant 0 : i32
    return %c0_i32, %c0_i32_0 : i32, i32
  }
  func.func @transform_2(%arg0: i32, %arg1: i32) -> (i32, i32) {
    %c0_i32 = arith.constant 0 : i32
    %c0_i32_0 = arith.constant 0 : i32
    %c0_i32_1 = arith.constant 0 : i32
    return %c0_i32, %c0_i32_0 : i32, i32
  }
  func.func @transform_3(%arg0: i32, %arg1: i32) -> (i32, i32, i32) {
    %c0_i32 = arith.constant 0 : i32
    %c0_i32_0 = arith.constant 0 : i32
    %c0_i32_1 = arith.constant 0 : i32
    %c0_i32_2 = arith.constant 0 : i32
    return %c0_i32, %c0_i32_0, %c0_i32_1 : i32, i32, i32
  }
  func.func @transform_4(%arg0: i32, %arg1: i32) -> (i32, i32) {
    %c0_i32 = arith.constant 0 : i32
    %c0_i32_0 = arith.constant 0 : i32
    %c0_i32_1 = arith.constant 0 : i32
    return %c0_i32, %c0_i32_0 : i32, i32
  }
  func.func @transform_5(%arg0: i32, %arg1: i32) -> (i32, i32) {
    %c2_i32 = arith.constant 2 : i32
    %0 = arith.muli %arg0, %c2_i32 : i32
    %1 = arith.addi %0, %arg1 : i32
    %c0_i32 = arith.constant 0 : i32
    %c0_i32_0 = arith.constant 0 : i32
    return %1, %c0_i32 : i32, i32
  }
}

</mosaic_0001>

<llo_original>
// kernel: tpu_custom_call.1
$region0: #{tpu_custom_call.1}
  #allocation0 [shape = 'u32[]', space=smem, size = 0x4, offset = 0x4, fixed_abs, tag = 'smem constant byte address 0x4 - core index']
  #allocation1 [shape = 'u32[144,128]{1,0:T(1,128)}', space=vmem, size = 0x12000, scoped, tag = 'internal scratch']
  #allocation2 [shape = 'f32[160,128]{1,0:T(8,128)}', space=vmem, size = 0x14000, scoped, tag = 'scratch operand']
  #allocation3 [shape = 's32[1]{0}', space=sflag, size = 0x4, scoped, tag = 'scratch operand']
  #allocation4 [shape = 'bf16[160,384]{1,0:T(16,128)(2,1)}', space=vmem, size = 0x1e000, scoped, tag = 'scratch operand']
  #allocation11 [shape = 's32[]', space=sflag, size = 0x4, offset = 0, fixed_abs, tag = 'sflag constant byte address 0x0 - dummy sync flag']
  #allocation12 [shape = 's32[]', space=sflag, size = 0x4, offset = 0, fixed_abs, tag = 'sflag constant byte address 0x0 - dummy sync flag']
  #allocation13 [shape = 'u32[]', space=smem, size = 0x4, offset = 0x44, fixed_abs, tag = 'smem constant byte address 0x44 - assertion arg 0']
  #allocation14 [shape = 'u32[]', space=smem, size = 0x4, offset = 0x48, fixed_abs, tag = 'smem constant byte address 0x48 - assertion arg 1']
  %s0 = inlined_call_operand.hbm [shape: f32[576,128], index: 0, kind: input, shape index: {}]
  %s1 = inlined_call_operand.hbm [shape: bf16[128,128], index: 1, kind: input, shape index: {}]
  %s2 = inlined_call_operand.vmem [shape: f32[1,128], index: 2, kind: input, shape index: {}]
  %s3 = inlined_call_operand.hbm [shape: bf16[3,384,128], index: 3, kind: input, shape index: {}]
  %s4 = inlined_call_operand.vmem [shape: f32[1,128], index: 4, kind: input, shape index: {}]
  %s5 = inlined_call_operand.hbm [shape: f32[512,128], index: 5, kind: output, shape index: {}]
  %s6 = sld [smem:[#allocation0]]
  $region69: #{tpu_custom_call.1} parent=0
    _
  %s8 = ssub.s32 1, %s6
  %s9 = scalar_select 0, %s8, %s6
  $region1: #{tpu_custom_call.1} parent=0
    #allocation5 [shape = 'u8[32768]{0}', space=vmem, size = 0x8000, scoped, tag = 'input window, operand 1, single buffered']
    #allocation6 [shape = 's32[2]{0}', space=sflag, size = 0x8, scoped, tag = 'scoped memory for tpu_custom_call.1']
    #allocation7 [shape = 's32[2]{0}', space=sflag, size = 0x8, scoped, tag = 'scoped memory for tpu_custom_call.1']
    #allocation8 [shape = 'u8[294912]{0}', space=vmem, size = 0x48000, scoped, tag = 'input window, operand 3, single buffered']
    #allocation9 [shape = 's32[1]{0}', space=sflag, size = 0x4, scoped, tag = 'scoped memory for tpu_custom_call.1']
    #allocation10 [shape = 'u8[131072]{0}', space=vmem, size = 0x20000, scoped, tag = 'output window, operand 0']
    %10 = vsyncpa [#allocation6], 0
    %11 = vsyncpa [#allocation9], 0
    %12 = vsyncpa [#allocation7], 0
    %s13 = scalar_lea.sflag [#allocation7], 1
    %14 = vsyncpa %s13, 0
    loop: start=0, step=1, limit=6
    $region2: #{tpu_custom_call.1} parent=1 // loop_pre_header
      _
    $region3: #{tpu_custom_call.1} parent=1 // loop_header
      %s16 = sphi 0, %s20
      %p17 = scmp.ge.s32.totalorder %s16, 6
      %s23 = sphi 0, %s35
      %s24 = sphi 0, %s31
      %s25 = sphi 0, %s23
      %s26 = sphi 0, %s24
      %s27 = sphi 0, %s25
      %s28 = sphi 0, %s26
      %s36 = sphi 0, %s36
      %s38 = sphi 0, %s36
      %s39 = sphi 0, %s38
      %s53 = sphi 0, %s39
      %s57 = sphi 0, %s57
      %s59 = sphi 0, %s57
      %s60 = sphi 0, %s59
      %s74 = sphi 0, %s60
      %s78 = sphi 0, %s78
      %s80 = sphi 0, %s78
      %s81 = sphi 0, %s80
      %s95 = sphi 0, %s81
      %s99 = sphi 0, %s99
      %s101 = sphi 0, %s99
      %s102 = sphi 0, %s101
      %s116 = sphi 0, %s102
      %s126 = sphi 0, %s128
      %s129 = sphi 0, %s126
      %s130 = sphi 0, %s129
      %s146 = sphi 0, %s130
    $region4: #{tpu_custom_call.1} parent=1 // loop_header_branch
      %19 = sbr.rel (%p17) target = $region8
    $region5: #{tpu_custom_call.1} parent=1 // loop_body
      %s21 = ssub.s32 %s16, 1
      %s22 = ssub.s32 %s16, 2
      %s29 = sadd.s32 1, %s24
      %p30 = scmp.ge.s32.totalorder %s29, 2
      %s31 = scalar_select %p30, 0, %s29
      %s32 = sadd.s32 1, %s23
      %s33 = scalar_select %p30, %s32, %s23
      %p34 = scmp.ge.s32.totalorder %s33, 2
      %s35 = scalar_select %p34, 0, %s33
      %s37 = sadd.s32 %s36, 1
      %p40 = scmp.eq.s32.totalorder %s16, 3
      %p41 = scmp.ne.s32.totalorder %s36, %s38
      %p42 = scmp.eq.s32.totalorder %s16, 0
      %p43 = por %p41, %p42
      %p44 = scmp.ne.s32.totalorder %s36, %s38
      %p45 = scmp.eq.s32.totalorder %s21, 3
      %p46 = por %p44, %p45
      %p47 = scmp.ne.s32.totalorder %s38, %s39
      %p48 = scmp.eq.s32.totalorder %s21, 0
      %p49 = por %p47, %p48
      %p50 = scmp.ne.s32.totalorder %s38, %s39
      %p51 = scmp.eq.s32.totalorder %s22, 3
      %p52 = por %p50, %p51
      %p54 = scmp.ne.s32.totalorder %s39, %s53
      %p55 = scmp.eq.s32.totalorder %s22, 0
      %p56 = por %p54, %p55
      %s58 = sadd.s32 %s57, 1
      %p61 = scmp.eq.s32.totalorder %s16, 3
      %p62 = scmp.ne.s32.totalorder %s57, %s59
      %p63 = scmp.eq.s32.totalorder %s16, 0
      %p64 = por %p62, %p63
      %p65 = scmp.ne.s32.totalorder %s57, %s59
      %p66 = scmp.eq.s32.totalorder %s21, 3
      %p67 = por %p65, %p66
      %p68 = scmp.ne.s32.totalorder %s59, %s60
      %p69 = scmp.eq.s32.totalorder %s21, 0
      %p70 = por %p68, %p69
      %p71 = scmp.ne.s32.totalorder %s59, %s60
      %p72 = scmp.eq.s32.totalorder %s22, 3
      %p73 = por %p71, %p72
      %p75 = scmp.ne.s32.totalorder %s60, %s74
      %p76 = scmp.eq.s32.totalorder %s22, 0
      %p77 = por %p75, %p76
      %s79 = sadd.s32 %s78, 1
      %p82 = scmp.eq.s32.totalorder %s16, 3
      %p83 = scmp.ne.s32.totalorder %s78, %s80
      %p84 = scmp.eq.s32.totalorder %s16, 0
      %p85 = por %p83, %p84
      %p86 = scmp.ne.s32.totalorder %s78, %s80
      %p87 = scmp.eq.s32.totalorder %s21, 3
      %p88 = por %p86, %p87
      %p89 = scmp.ne.s32.totalorder %s80, %s81
      %p90 = scmp.eq.s32.totalorder %s21, 0
      %p91 = por %p89, %p90
      %p92 = scmp.ne.s32.totalorder %s80, %s81
      %p93 = scmp.eq.s32.totalorder %s22, 3
      %p94 = por %p92, %p93
      %p96 = scmp.ne.s32.totalorder %s81, %s95
      %p97 = scmp.eq.s32.totalorder %s22, 0
      %p98 = por %p96, %p97
      %s100 = sadd.s32 %s99, 1
      %p103 = scmp.eq.s32.totalorder %s16, 3
      %p104 = scmp.ne.s32.totalorder %s99, %s101
      %p105 = scmp.eq.s32.totalorder %s16, 0
      %p106 = por %p104, %p105
      %p107 = scmp.ne.s32.totalorder %s99, %s101
      %p108 = scmp.eq.s32.totalorder %s21, 3
      %p109 = por %p107, %p108
      %p110 = scmp.ne.s32.totalorder %s101, %s102
      %p111 = scmp.eq.s32.totalorder %s21, 0
      %p112 = por %p110, %p111
      %p113 = scmp.ne.s32.totalorder %s101, %s102
      %p114 = scmp.eq.s32.totalorder %s22, 3
      %p115 = por %p113, %p114
      %p117 = scmp.ne.s32.totalorder %s102, %s116
      %p118 = scmp.eq.s32.totalorder %s22, 0
      %p119 = por %p117, %p118
      %s120 = smul.u32 %s23, 2
      %s121 = sadd.s32 %s120, %s24
      %s122 = smul.u32 %s35, 2
      %s123 = sadd.s32 %s122, %s31
      %s124 = ssub.s32 %s121, %s123
      %p125 = scmp.eq.s32.totalorder %s124, 0
      %s127 = sadd.s32 %s126, 1
      %s128 = scalar_select %p125, %s126, %s127
      %p131 = pneg %p125
      %p132 = scmp.eq.s32.totalorder %s16, 3
      %p133 = por %p131, %p132
      %p134 = scmp.ne.s32.totalorder %s126, %s129
      %p135 = scmp.eq.s32.totalorder %s16, 0
      %p136 = por %p134, %p135
      %p137 = scmp.ne.s32.totalorder %s126, %s129
      %p138 = scmp.eq.s32.totalorder %s21, 3
      %p139 = por %p137, %p138
      %p140 = scmp.ne.s32.totalorder %s129, %s130
      %p141 = scmp.eq.s32.totalorder %s21, 0
      %p142 = por %p140, %p141
      %p143 = scmp.ne.s32.totalorder %s129, %s130
      %p144 = scmp.eq.s32.totalorder %s22, 3
      %p145 = por %p143, %p144
      %p147 = scmp.ne.s32.totalorder %s130, %s146
      %p148 = scmp.eq.s32.totalorder %s22, 0
      %p149 = por %p147, %p148
      %p150 = scmp.le.s32.totalorder 1, %s16
      %p151 = scmp.lt.s32.totalorder %s16, 5
      %p152 = pnand %p150, %p151
      %p153 = pneg %p152
      // Predicated region
      $region9: #{tpu_custom_call.1} parent=5 // pred_check
        _
      $region10: #{tpu_custom_call.1} parent=5 // pred_check_branch
        %155 = sbr.rel (%p152) target = $region12
      $region11: #{tpu_custom_call.1} parent=5 // pred_region
        %s156 = ssub.s32 %s16, 1
        // Predicated region
        $region13: #{tpu_custom_call.1} parent=11 // pred_check
          %p157 = pneg %p49
        $region14: #{tpu_custom_call.1} parent=11 // pred_check_branch
          %159 = sbr.rel (%p157) target = $region16
        $region15: #{tpu_custom_call.1} parent=11 // pred_region
          %s161 = ssub.s32 1024, 1024
          %162 = vsyncadd [#allocation6], %s161
          %s163 = sshll.u32 [#allocation5], 4
          %s164 = int_to_ptr.vmem [resolvable:$true] %s163
          %169 = dma.hbm_to_vmem [thread:$0]  %s1, 1024, %s164, [#allocation6], 64, 64, 4
        $region16: #{tpu_custom_call.1} parent=11 // pred_fallthru
          _
        // Predicated region
        $region17: #{tpu_custom_call.1} parent=11 // pred_check
          %p170 = pneg %p70
        $region18: #{tpu_custom_call.1} parent=11 // pred_check_branch
          %172 = sbr.rel (%p170) target = $region20
        $region19: #{tpu_custom_call.1} parent=11 // pred_region
          _
        $region20: #{tpu_custom_call.1} parent=11 // pred_fallthru
          _
        // Predicated region
        $region21: #{tpu_custom_call.1} parent=11 // pred_check
          %p173 = pneg %p91
        $region22: #{tpu_custom_call.1} parent=11 // pred_check_branch
          %175 = sbr.rel (%p173) target = $region24
        $region23: #{tpu_custom_call.1} parent=11 // pred_region
          %s177 = ssub.s32 9216, 9216
          %178 = vsyncadd [#allocation9], %s177
          %s179 = sshll.u32 [#allocation8], 4
          %s180 = int_to_ptr.vmem [resolvable:$true] %s179
          %185 = dma.hbm_to_vmem [thread:$0]  %s3, 9216, %s180, [#allocation9], 64, 64, 4
        $region24: #{tpu_custom_call.1} parent=11 // pred_fallthru
          _
        // Predicated region
        $region25: #{tpu_custom_call.1} parent=11 // pred_check
          %p186 = pneg %p112
        $region26: #{tpu_custom_call.1} parent=11 // pred_check_branch
          %188 = sbr.rel (%p186) target = $region28
        $region27: #{tpu_custom_call.1} parent=11 // pred_region
          _
        $region28: #{tpu_custom_call.1} parent=11 // pred_fallthru
          _
      $region12: #{tpu_custom_call.1} parent=5 // pred_fallthru
        _
      %p189 = scmp.lt.s32.totalorder %s16, 4
      // Predicated region
      $region29: #{tpu_custom_call.1} parent=5 // pred_check
        %p190 = pneg %p189
      $region30: #{tpu_custom_call.1} parent=5 // pred_check_branch
        %192 = sbr.rel (%p190) target = $region32
      $region31: #{tpu_custom_call.1} parent=5 // pred_region
        _
      $region32: #{tpu_custom_call.1} parent=5 // pred_fallthru
        _
      %p193 = scmp.le.s32.totalorder 1, %s16
      %p194 = scmp.lt.s32.totalorder %s16, 5
      %p195 = pnand %p193, %p194
      %p196 = pneg %p195
      // Predicated region
      $region33: #{tpu_custom_call.1} parent=5 // pred_check
        _
      $region34: #{tpu_custom_call.1} parent=5 // pred_check_branch
        %198 = sbr.rel (%p195) target = $region36
      $region35: #{tpu_custom_call.1} parent=5 // pred_region
        %s199 = ssub.s32 %s16, 1
        // Predicated region
        $region37: #{tpu_custom_call.1} parent=35 // pred_check
          %p200 = pneg %p49
        $region38: #{tpu_custom_call.1} parent=35 // pred_check_branch
          %202 = sbr.rel (%p200) target = $region40
        $region39: #{tpu_custom_call.1} parent=35 // pred_region
          %203 = dma.done [#allocation6], 1024
        $region40: #{tpu_custom_call.1} parent=35 // pred_fallthru
          _
        // Predicated region
        $region41: #{tpu_custom_call.1} parent=35 // pred_check
          %p204 = pneg %p91
        $region42: #{tpu_custom_call.1} parent=35 // pred_check_branch
          %206 = sbr.rel (%p204) target = $region44
        $region43: #{tpu_custom_call.1} parent=35 // pred_region
          %207 = dma.done [#allocation9], 9216
        $region44: #{tpu_custom_call.1} parent=35 // pred_fallthru
          _
        %p208 = pneg %p49
        %p209 = pneg %p46
        %p210 = pneg %p70
        %p211 = pneg %p67
        %p212 = pneg %p91
        %p213 = pneg %p88
        %p214 = pneg %p112
        %p215 = pneg %p109
        %p216 = pneg %p142
        %p217 = pneg %p139
        %s218 = sand.u32 %s129, 1
        %s219 = scalar_lea.sflag [#allocation7], %s218
        %s220 = sand.u32 %s129, 1
        %s221 = smul.addr %s220, 128
        %s222 = scalar_lea.vmem [#allocation10], %s221
        %s223 = smul.u32 %s25, 2
        %s224 = sadd.s32 %s223, %s26
        %s225 = smul.u32 16, %s224
        %s227 = smul.u32 %s25, 18
        %s228 = smul.u32 %s26, 8
        %s229 = sadd.s32 %s227, %s228
        %s230 = smul.u32 %s229, 16
        %s231 = smul.addr %s230, 16
        %s232 = scalar_lea.hbm %s0, %s231
        // Predicated region
        $region45: #{tpu_custom_call.1} parent=35 // pred_check
          _
        $region46: #{tpu_custom_call.1} parent=35 // pred_check_branch
          %234 = sbr.rel target = $region48
        $region47: #{tpu_custom_call.1} parent=35 // pred_region
          %235 = sst [smem:[#allocation13]] [#allocation12]
          %236 = sst [smem:[#allocation14]] [#allocation11]
        $region48: #{tpu_custom_call.1} parent=35 // pred_fallthru
          _
        %238 = shalt.err (0)
        %s240 = sshll.u32 [#allocation2], 4
        %s241 = int_to_ptr.vmem [resolvable:$true] %s240
        %243 = dma.hbm_to_vmem [thread:$0]  %s232, 2560, %s241, [#allocation3]
        %s244 = smul.u32 160, 1
        %s245 = sshll.u32 %s244, 4
        %246 = dma.done [#allocation3], %s245
        %v247 = vld [vmem:[#allocation2] sm:$0xff]
        %v248 = vld [vmem:[#allocation2 + $0x8] sm:$0xff]
        %v249 = vld [vmem:[#allocation2 + $0x10] sm:$0xff]
        %v250 = vld [vmem:[#allocation2 + $0x18] sm:$0xff]
        %v251 = vld [vmem:[#allocation2 + $0x20] sm:$0xff]
        %v252 = vld [vmem:[#allocation2 + $0x28] sm:$0xff]
        %v253 = vld [vmem:[#allocation2 + $0x30] sm:$0xff]
        %v254 = vld [vmem:[#allocation2 + $0x38] sm:$0xff]
        %v255 = vld [vmem:[#allocation2 + $0x40] sm:$0xff]
        %v256 = vld [vmem:[#allocation2 + $0x48] sm:$0xff]
        %v257 = vld [vmem:[#allocation2 + $0x50] sm:$0xff]
        %v258 = vld [vmem:[#allocation2 + $0x58] sm:$0xff]
        %v259 = vld [vmem:[#allocation2 + $0x60] sm:$0xff]
        %v260 = vld [vmem:[#allocation2 + $0x68] sm:$0xff]
        %v261 = vld [vmem:[#allocation2 + $0x70] sm:$0xff]
        %v262 = vld [vmem:[#allocation2 + $0x78] sm:$0xff]
        %v263 = vld [vmem:[#allocation2 + $0x80] sm:$0xff]
        %v264 = vld [vmem:[#allocation2 + $0x88] sm:$0xff]
        %v265 = vld [vmem:[#allocation2 + $0x90] sm:$0xff]
        %v266 = vld [vmem:[#allocation2 + $0x98] sm:$0xff]
        %v267 = vpack.c.bf16 %v248, %v247
        %v268 = vpack.c.bf16 %v250, %v249
        %v269 = vpack.c.bf16 %v252, %v251
        %v270 = vpack.c.bf16 %v254, %v253
        %v271 = vpack.c.bf16 %v256, %v255
        %v272 = vpack.c.bf16 %v258, %v257
        %v273 = vpack.c.bf16 %v260, %v259
        %v274 = vpack.c.bf16 %v262, %v261
        %v275 = vpack.c.bf16 %v264, %v263
        %v276 = vpack.c.bf16 %v266, %v265
        %v277 = vld [vmem:[#allocation5] sm:$0xf]
        %v278 = vld [vmem:[#allocation5 + $0x4] sm:$0xf]
        %v279 = vld [vmem:[#allocation5 + $0x8] sm:$0xf]
        %v280 = vld [vmem:[#allocation5 + $0xc] sm:$0xf]
        %v281 = vld [vmem:[#allocation5 + $0x10] sm:$0xf]
        %v282 = vld [vmem:[#allocation5 + $0x14] sm:$0xf]
        %v283 = vld [vmem:[#allocation5 + $0x18] sm:$0xf]
        %v284 = vld [vmem:[#allocation5 + $0x1c] sm:$0xf]
        %v285 = vld [vmem:[#allocation5 + $0x20] sm:$0xf]
        %v286 = vld [vmem:[#allocation5 + $0x24] sm:$0xf]
        %v287 = vld [vmem:[#allocation5 + $0x28] sm:$0xf]
        %v288 = vld [vmem:[#allocation5 + $0x2c] sm:$0xf]
        %v289 = vld [vmem:[#allocation5 + $0x30] sm:$0xf]
        %v290 = vld [vmem:[#allocation5 + $0x34] sm:$0xf]
        %v291 = vld [vmem:[#allocation5 + $0x38] sm:$0xf]
        %v292 = vld [vmem:[#allocation5 + $0x3c] sm:$0xf]
        %v293 = vld [vmem:[%s2] sm:$0x1]
        %v295 = vlaneseq
        %v296 = vshrl.u32 %v295, 7
        %v297 = vsub.s32 0, %v296
        %v298 = vrot.slane %v293, %v297
        %v316 = vunpack.c.l.b16 %v277
        %v317 = vunpack.c.l.b16 %v278
        %v318 = vunpack.c.l.b16 %v279
        %v319 = vunpack.c.l.b16 %v280
        %v320 = vunpack.c.l.b16 %v281
        %v321 = vunpack.c.l.b16 %v282
        %v322 = vunpack.c.l.b16 %v283
        %v323 = vunpack.c.l.b16 %v284
        %v324 = vunpack.c.l.b16 %v285
        %v325 = vunpack.c.l.b16 %v286
        %v326 = vunpack.c.l.b16 %v287
        %v327 = vunpack.c.l.b16 %v288
        %v328 = vunpack.c.l.b16 %v289
        %v329 = vunpack.c.l.b16 %v290
        %v330 = vunpack.c.l.b16 %v291
        %v331 = vunpack.c.l.b16 %v292
        %v332 = vpack.c.b16 %v317, %v316
        %v333 = vpack.c.b16 %v319, %v318
        %v334 = vpack.c.b16 %v321, %v320
        %v335 = vpack.c.b16 %v323, %v322
        %v336 = vpack.c.b16 %v325, %v324
        %v337 = vpack.c.b16 %v327, %v326
        %v338 = vpack.c.b16 %v329, %v328
        %v339 = vpack.c.b16 %v331, %v330
        %348 = vmatprep.subr.bf16.mxu0 0
        %349 = vmatpush1.bf16.msra.mxu0 %v332
        %350 = vmatprep.subr.bf16.mxu0 0
        %351 = vmatpush1.bf16.msra.mxu0 %v333
        %352 = vmatprep.subr.bf16.mxu0 0
        %353 = vmatpush1.bf16.msra.mxu0 %v334
        %354 = vmatprep.subr.bf16.mxu0 0
        %355 = vmatpush1.bf16.msra.mxu0 %v335
        %356 = vmatprep.subr.bf16.mxu0 0
        %357 = vmatpush1.bf16.msra.mxu0 %v336
        %358 = vmatprep.subr.bf16.mxu0 0
        %359 = vmatpush1.bf16.msra.mxu0 %v337
        %360 = vmatprep.subr.bf16.mxu0 0
        %361 = vmatpush1.bf16.msra.mxu0 %v338
        %362 = vmatprep.subr.bf16.mxu0 0
        %363 = vmatpush1.bf16.msra.mxu0 %v339
        %364 = vmatprep.subr.bf16.mxu0 0
        %365 = vmatpush1.bf16.msra.mxu0 0
        %366 = vmatprep.subr.bf16.mxu0 0
        %367 = vmatpush1.bf16.msra.mxu0 0
        %368 = vmatprep.subr.bf16.mxu0 0
        %369 = vmatpush1.bf16.msra.mxu0 0
        %370 = vmatprep.subr.bf16.mxu0 0
        %371 = vmatpush1.bf16.msra.mxu0 0
        %372 = vmatprep.subr.bf16.mxu0 0
        %373 = vmatpush1.bf16.msra.mxu0 0
        %374 = vmatprep.subr.bf16.mxu0 0
        %375 = vmatpush1.bf16.msra.mxu0 0
        %376 = vmatprep.subr.bf16.mxu0 0
        %377 = vmatpush1.bf16.msra.mxu0 0
        %378 = vmatprep.subr.bf16.mxu0 0
        %379 = vmatpush1.bf16.msra.mxu0 0
        %380 = vmatprep.mubr.bf16.mxu0 0
        %381 = vmatmul.mubr.bf16.gmra.mrb[0].mxu0 %v267
        %v382 = vpop.f32.mrb[0].mxu0
        %v383 = vadd.f32 %v298, %v382
        %v384 = vpop.f32.mrb[0].mxu0
        %v385 = vpop.f32.mrb[0].mxu0
        %v386 = vadd.f32 %v298, %v385
        %v387 = vpop.f32.mrb[0].mxu0
        %388 = vmatprep.mubr.bf16.mxu0 0
        %389 = vmatmul.mubr.bf16.gmra.mrb[0].mxu0 %v268
        %v390 = vpop.f32.mrb[0].mxu0
        %v391 = vadd.f32 %v298, %v390
        %v392 = vpop.f32.mrb[0].mxu0
        %v393 = vpop.f32.mrb[0].mxu0
        %v394 = vadd.f32 %v298, %v393
        %v395 = vpop.f32.mrb[0].mxu0
        %396 = vmatprep.mubr.bf16.mxu0 0
        %397 = vmatmul.mubr.bf16.gmra.mrb[0].mxu0 %v269
        %v398 = vpop.f32.mrb[0].mxu0
        %v399 = vadd.f32 %v298, %v398
        %v400 = vpop.f32.mrb[0].mxu0
        %v401 = vpop.f32.mrb[0].mxu0
        %v402 = vadd.f32 %v298, %v401
        %v403 = vpop.f32.mrb[0].mxu0
        %404 = vmatprep.mubr.bf16.mxu0 0
        %405 = vmatmul.mubr.bf16.gmra.mrb[0].mxu0 %v270
        %v406 = vpop.f32.mrb[0].mxu0
        %v407 = vadd.f32 %v298, %v406
        %v408 = vpop.f32.mrb[0].mxu0
        %v409 = vpop.f32.mrb[0].mxu0
        %v410 = vadd.f32 %v298, %v409
        %v411 = vpop.f32.mrb[0].mxu0
        %412 = vmatprep.mubr.bf16.mxu0 0
        %413 = vmatmul.mubr.bf16.gmra.mrb[0].mxu0 %v271
        %v414 = vpop.f32.mrb[0].mxu0
        %v415 = vadd.f32 %v298, %v414
        %v416 = vpop.f32.mrb[0].mxu0
        %v417 = vpop.f32.mrb[0].mxu0
        %v418 = vadd.f32 %v298, %v417
        %v419 = vpop.f32.mrb[0].mxu0
        %420 = vmatprep.mubr.bf16.mxu0 0
        %421 = vmatmul.mubr.bf16.gmra.mrb[0].mxu0 %v272
        %v422 = vpop.f32.mrb[0].mxu0
        %v423 = vadd.f32 %v298, %v422
        %v424 = vpop.f32.mrb[0].mxu0
        %v425 = vpop.f32.mrb[0].mxu0
        %v426 = vadd.f32 %v298, %v425
        %v427 = vpop.f32.mrb[0].mxu0
        %428 = vmatprep.mubr.bf16.mxu0 0
        %429 = vmatmul.mubr.bf16.gmra.mrb[0].mxu0 %v273
        %v430 = vpop.f32.mrb[0].mxu0
        %v431 = vadd.f32 %v298, %v430
        %v432 = vpop.f32.mrb[0].mxu0
        %v433 = vpop.f32.mrb[0].mxu0
        %v434 = vadd.f32 %v298, %v433
        %v435 = vpop.f32.mrb[0].mxu0
        %436 = vmatprep.mubr.bf16.mxu0 0
        %437 = vmatmul.mubr.bf16.gmra.mrb[0].mxu0 %v274
        %v438 = vpop.f32.mrb[0].mxu0
        %v439 = vadd.f32 %v298, %v438
        %v440 = vpop.f32.mrb[0].mxu0
        %v441 = vpop.f32.mrb[0].mxu0
        %v442 = vadd.f32 %v298, %v441
        %v443 = vpop.f32.mrb[0].mxu0
        %444 = vmatprep.mubr.bf16.mxu0 0
        %445 = vmatmul.mubr.bf16.gmra.mrb[0].mxu0 %v275
        %v446 = vpop.f32.mrb[0].mxu0
        %v447 = vadd.f32 %v298, %v446
        %v448 = vpop.f32.mrb[0].mxu0
        %v449 = vpop.f32.mrb[0].mxu0
        %v450 = vadd.f32 %v298, %v449
        %v451 = vpop.f32.mrb[0].mxu0
        %452 = vmatprep.mubr.bf16.mxu0 0
        %453 = vmatmul.mubr.bf16.gmra.mrb[0].mxu0 %v276
        %v454 = vpop.f32.mrb[0].mxu0
        %v455 = vadd.f32 %v298, %v454
        %v456 = vpop.f32.mrb[0].mxu0
        %v457 = vpop.f32.mrb[0].mxu0
        %v458 = vadd.f32 %v298, %v457
        %v459 = vpop.f32.mrb[0].mxu0
        %460 = vdwg.mxu0
        %v461 = vxor.u32 %v383, 2147483648
        %v462 = vxor.u32 %v386, 2147483648
        %v463 = vxor.u32 %v391, 2147483648
        %v464 = vxor.u32 %v394, 2147483648
        %v465 = vxor.u32 %v399, 2147483648
        %v466 = vxor.u32 %v402, 2147483648
        %v467 = vxor.u32 %v407, 2147483648
        %v468 = vxor.u32 %v410, 2147483648
        %v469 = vxor.u32 %v415, 2147483648
        %v470 = vxor.u32 %v418, 2147483648
        %v471 = vxor.u32 %v423, 2147483648
        %v472 = vxor.u32 %v426, 2147483648
        %v473 = vxor.u32 %v431, 2147483648
        %v474 = vxor.u32 %v434, 2147483648
        %v475 = vxor.u32 %v439, 2147483648
        %v476 = vxor.u32 %v442, 2147483648
        %v477 = vxor.u32 %v447, 2147483648
        %v478 = vxor.u32 %v450, 2147483648
        %v479 = vxor.u32 %v455, 2147483648
        %v480 = vxor.u32 %v458, 2147483648
        %v481 = vmul.f32 %v461, 1.442695
        %v482 = vpow.pop %v481
        %v483 = vmul.f32 %v462, 1.442695
        %v484 = vpow.pop %v483
        %v485 = vmul.f32 %v463, 1.442695
        %v486 = vpow.pop %v485
        %v487 = vmul.f32 %v464, 1.442695
        %v488 = vpow.pop %v487
        %v489 = vmul.f32 %v465, 1.442695
        %v490 = vpow.pop %v489
        %v491 = vmul.f32 %v466, 1.442695
        %v492 = vpow.pop %v491
        %v493 = vmul.f32 %v467, 1.442695
        %v494 = vpow.pop %v493
        %v495 = vmul.f32 %v468, 1.442695
        %v496 = vpow.pop %v495
        %v497 = vmul.f32 %v469, 1.442695
        %v498 = vpow.pop %v497
        %v499 = vmul.f32 %v470, 1.442695
        %v500 = vpow.pop %v499
        %v501 = vmul.f32 %v471, 1.442695
        %v502 = vpow.pop %v501
        %v503 = vmul.f32 %v472, 1.442695
        %v504 = vpow.pop %v503
        %v505 = vmul.f32 %v473, 1.442695
        %v506 = vpow.pop %v505
        %v507 = vmul.f32 %v474, 1.442695
        %v508 = vpow.pop %v507
        %v509 = vmul.f32 %v475, 1.442695
        %v510 = vpow.pop %v509
        %v511 = vmul.f32 %v476, 1.442695
        %v512 = vpow.pop %v511
        %v513 = vmul.f32 %v477, 1.442695
        %v514 = vpow.pop %v513
        %v515 = vmul.f32 %v478, 1.442695
        %v516 = vpow.pop %v515
        %v517 = vmul.f32 %v479, 1.442695
        %v518 = vpow.pop %v517
        %v519 = vmul.f32 %v480, 1.442695
        %v520 = vpow.pop %v519
        %v521 = vadd.f32 %v482, 1.0
        %v522 = vadd.f32 %v484, 1.0
        %v523 = vadd.f32 %v486, 1.0
        %v524 = vadd.f32 %v488, 1.0
        %v525 = vadd.f32 %v490, 1.0
        %v526 = vadd.f32 %v492, 1.0
        %v527 = vadd.f32 %v494, 1.0
        %v528 = vadd.f32 %v496, 1.0
        %v529 = vadd.f32 %v498, 1.0
        %v530 = vadd.f32 %v500, 1.0
        %v531 = vadd.f32 %v502, 1.0
        %v532 = vadd.f32 %v504, 1.0
        %v533 = vadd.f32 %v506, 1.0
        %v534 = vadd.f32 %v508, 1.0
        %v535 = vadd.f32 %v510, 1.0
        %v536 = vadd.f32 %v512, 1.0
        %v537 = vadd.f32 %v514, 1.0
        %v538 = vadd.f32 %v516, 1.0
        %v539 = vadd.f32 %v518, 1.0
        %v540 = vadd.f32 %v520, 1.0
        %v541 = vrcp.pop %v521
        %v542 = vmul.f32 1.0, %v541
        %v543 = vrcp.pop %v522
        %v544 = vmul.f32 1.0, %v543
        %v545 = vrcp.pop %v523
        %v546 = vmul.f32 1.0, %v545
        %v547 = vrcp.pop %v524
        %v548 = vmul.f32 1.0, %v547
        %v549 = vrcp.pop %v525
        %v550 = vmul.f32 1.0, %v549
        %v551 = vrcp.pop %v526
        %v552 = vmul.f32 1.0, %v551
        %v553 = vrcp.pop %v527
        %v554 = vmul.f32 1.0, %v553
        %v555 = vrcp.pop %v528
        %v556 = vmul.f32 1.0, %v555
        %v557 = vrcp.pop %v529
        %v558 = vmul.f32 1.0, %v557
        %v559 = vrcp.pop %v530
        %v560 = vmul.f32 1.0, %v559
        %v561 = vrcp.pop %v531
        %v562 = vmul.f32 1.0, %v561
        %v563 = vrcp.pop %v532
        %v564 = vmul.f32 1.0, %v563
        %v565 = vrcp.pop %v533
        %v566 = vmul.f32 1.0, %v565
        %v567 = vrcp.pop %v534
        %v568 = vmul.f32 1.0, %v567
        %v569 = vrcp.pop %v535
        %v570 = vmul.f32 1.0, %v569
        %v571 = vrcp.pop %v536
        %v572 = vmul.f32 1.0, %v571
        %v573 = vrcp.pop %v537
        %v574 = vmul.f32 1.0, %v573
        %v575 = vrcp.pop %v538
        %v576 = vmul.f32 1.0, %v575
        %v577 = vrcp.pop %v539
        %v578 = vmul.f32 1.0, %v577
        %v579 = vrcp.pop %v540
        %v580 = vmul.f32 1.0, %v579
        %v581 = vmul.f32 %v383, %v542
        %v582 = vmul.f32 %v386, %v544
        %v583 = vmul.f32 %v391, %v546
        %v584 = vmul.f32 %v394, %v548
        %v585 = vmul.f32 %v399, %v550
        %v586 = vmul.f32 %v402, %v552
        %v587 = vmul.f32 %v407, %v554
        %v588 = vmul.f32 %v410, %v556
        %v589 = vmul.f32 %v415, %v558
        %v590 = vmul.f32 %v418, %v560
        %v591 = vmul.f32 %v423, %v562
        %v592 = vmul.f32 %v426, %v564
        %v593 = vmul.f32 %v431, %v566
        %v594 = vmul.f32 %v434, %v568
        %v595 = vmul.f32 %v439, %v570
        %v596 = vmul.f32 %v442, %v572
        %v597 = vmul.f32 %v447, %v574
        %v598 = vmul.f32 %v450, %v576
        %v599 = vmul.f32 %v455, %v578
        %v600 = vmul.f32 %v458, %v580
        %v601 = vlaneseq
        %v602 = vshrl.u32 %v601, 7
        %v603 = vadd.s32 %v602, 8
        %v604 = vadd.s32 %v602, 16
        %v605 = vadd.s32 %v602, 24
        %v606 = vadd.s32 %v602, 32
        %v607 = vadd.s32 %v602, 40
        %v608 = vadd.s32 %v602, 48
        %v609 = vadd.s32 %v602, 56
        %v610 = vadd.s32 %v602, 64
        %v611 = vadd.s32 %v602, 72
        %v612 = vadd.s32 %v602, 80
        %v613 = vadd.s32 %v602, 88
        %v614 = vadd.s32 %v602, 96
        %v615 = vadd.s32 %v602, 104
        %v616 = vadd.s32 %v602, 112
        %v617 = vadd.s32 %v602, 120
        %v618 = vadd.s32 %v602, 128
        %v619 = vadd.s32 %v602, 136
        %v620 = vadd.s32 %v602, 144
        %v621 = vadd.s32 %v602, 152
        %vm622 = vcmp.lt.s32.totalorder %v602, 0
        %v623 = vsub.s32 0, %v602
        %v624 = vsel %vm622, %v623, %v602
        %v625 = vshrl.u32 %v624, 4
        %v626 = vand.u32 %v624, 15
        %v627 = vsub.s32 0, %v626
        %v628 = vsel %vm622, %v627, %v626
        %vm629 = vcmp.lt.s32.totalorder %v603, 0
        %v630 = vsub.s32 0, %v603
        %v631 = vsel %vm629, %v630, %v603
        %v632 = vshrl.u32 %v631, 4
        %v633 = vand.u32 %v631, 15
        %v634 = vsub.s32 0, %v633
        %v635 = vsel %vm629, %v634, %v633
        %vm636 = vcmp.lt.s32.totalorder %v604, 0
        %v637 = vsub.s32 0, %v604
        %v638 = vsel %vm636, %v637, %v604
        %v639 = vshrl.u32 %v638, 4
        %v640 = vand.u32 %v638, 15
        %v641 = vsub.s32 0, %v640
        %v642 = vsel %vm636, %v641, %v640
        %vm643 = vcmp.lt.s32.totalorder %v605, 0
        %v644 = vsub.s32 0, %v605
        %v645 = vsel %vm643, %v644, %v605
        %v646 = vshrl.u32 %v645, 4
        %v647 = vand.u32 %v645, 15
        %v648 = vsub.s32 0, %v647
        %v649 = vsel %vm643, %v648, %v647
        %vm650 = vcmp.lt.s32.totalorder %v606, 0
        %v651 = vsub.s32 0, %v606
        %v652 = vsel %vm650, %v651, %v606
        %v653 = vshrl.u32 %v652, 4
        %v654 = vand.u32 %v652, 15
        %v655 = vsub.s32 0, %v654
        %v656 = vsel %vm650, %v655, %v654
        %vm657 = vcmp.lt.s32.totalorder %v607, 0
        %v658 = vsub.s32 0, %v607
        %v659 = vsel %vm657, %v658, %v607
        %v660 = vshrl.u32 %v659, 4
        %v661 = vand.u32 %v659, 15
        %v662 = vsub.s32 0, %v661
        %v663 = vsel %vm657, %v662, %v661
        %vm664 = vcmp.lt.s32.totalorder %v608, 0
        %v665 = vsub.s32 0, %v608
        %v666 = vsel %vm664, %v665, %v608
        %v667 = vshrl.u32 %v666, 4
        %v668 = vand.u32 %v666, 15
        %v669 = vsub.s32 0, %v668
        %v670 = vsel %vm664, %v669, %v668
        %vm671 = vcmp.lt.s32.totalorder %v609, 0
        %v672 = vsub.s32 0, %v609
        %v673 = vsel %vm671, %v672, %v609
        %v674 = vshrl.u32 %v673, 4
        %v675 = vand.u32 %v673, 15
        %v676 = vsub.s32 0, %v675
        %v677 = vsel %vm671, %v676, %v675
        %vm678 = vcmp.lt.s32.totalorder %v610, 0
        %v679 = vsub.s32 0, %v610
        %v680 = vsel %vm678, %v679, %v610
        %v681 = vshrl.u32 %v680, 4
        %v682 = vand.u32 %v680, 15
        %v683 = vsub.s32 0, %v682
        %v684 = vsel %vm678, %v683, %v682
        %vm685 = vcmp.lt.s32.totalorder %v611, 0
        %v686 = vsub.s32 0, %v611
        %v687 = vsel %vm685, %v686, %v611
        %v688 = vshrl.u32 %v687, 4
        %v689 = vand.u32 %v687, 15
        %v690 = vsub.s32 0, %v689
        %v691 = vsel %vm685, %v690, %v689
        %vm692 = vcmp.lt.s32.totalorder %v612, 0
        %v693 = vsub.s32 0, %v612
        %v694 = vsel %vm692, %v693, %v612
        %v695 = vshrl.u32 %v694, 4
        %v696 = vand.u32 %v694, 15
        %v697 = vsub.s32 0, %v696
        %v698 = vsel %vm692, %v697, %v696
        %vm699 = vcmp.lt.s32.totalorder %v613, 0
        %v700 = vsub.s32 0, %v613
        %v701 = vsel %vm699, %v700, %v613
        %v702 = vshrl.u32 %v701, 4
        %v703 = vand.u32 %v701, 15
        %v704 = vsub.s32 0, %v703
        %v705 = vsel %vm699, %v704, %v703
        %vm706 = vcmp.lt.s32.totalorder %v614, 0
        %v707 = vsub.s32 0, %v614
        %v708 = vsel %vm706, %v707, %v614
        %v709 = vshrl.u32 %v708, 4
        %v710 = vand.u32 %v708, 15
        %v711 = vsub.s32 0, %v710
        %v712 = vsel %vm706, %v711, %v710
        %vm713 = vcmp.lt.s32.totalorder %v615, 0
        %v714 = vsub.s32 0, %v615
        %v715 = vsel %vm713, %v714, %v615
        %v716 = vshrl.u32 %v715, 4
        %v717 = vand.u32 %v715, 15
        %v718 = vsub.s32 0, %v717
        %v719 = vsel %vm713, %v718, %v717
        %vm720 = vcmp.lt.s32.totalorder %v616, 0
        %v721 = vsub.s32 0, %v616
        %v722 = vsel %vm720, %v721, %v616
        %v723 = vshrl.u32 %v722, 4
        %v724 = vand.u32 %v722, 15
        %v725 = vsub.s32 0, %v724
        %v726 = vsel %vm720, %v725, %v724
        %vm727 = vcmp.lt.s32.totalorder %v617, 0
        %v728 = vsub.s32 0, %v617
        %v729 = vsel %vm727, %v728, %v617
        %v730 = vshrl.u32 %v729, 4
        %v731 = vand.u32 %v729, 15
        %v732 = vsub.s32 0, %v731
        %v733 = vsel %vm727, %v732, %v731
        %vm734 = vcmp.lt.s32.totalorder %v618, 0
        %v735 = vsub.s32 0, %v618
        %v736 = vsel %vm734, %v735, %v618
        %v737 = vshrl.u32 %v736, 4
        %v738 = vand.u32 %v736, 15
        %v739 = vsub.s32 0, %v738
        %v740 = vsel %vm734, %v739, %v738
        %vm741 = vcmp.lt.s32.totalorder %v619, 0
        %v742 = vsub.s32 0, %v619
        %v743 = vsel %vm741, %v742, %v619
        %v744 = vshrl.u32 %v743, 4
        %v745 = vand.u32 %v743, 15
        %v746 = vsub.s32 0, %v745
        %v747 = vsel %vm741, %v746, %v745
        %vm748 = vcmp.lt.s32.totalorder %v620, 0
        %v749 = vsub.s32 0, %v620
        %v750 = vsel %vm748, %v749, %v620
        %v751 = vshrl.u32 %v750, 4
        %v752 = vand.u32 %v750, 15
        %v753 = vsub.s32 0, %v752
        %v754 = vsel %vm748, %v753, %v752
        %vm755 = vcmp.lt.s32.totalorder %v621, 0
        %v756 = vsub.s32 0, %v621
        %v757 = vsel %vm755, %v756, %v621
        %v758 = vshrl.u32 %v757, 4
        %v759 = vand.u32 %v757, 15
        %v760 = vsub.s32 0, %v759
        %v761 = vsel %vm755, %v760, %v759
        %vm762 = vcmp.ne.s32.totalorder %v628, 0
        %vm763 = vcmp.ne.s32.totalorder %v635, 0
        %vm764 = vcmp.ne.s32.totalorder %v642, 0
        %vm765 = vcmp.ne.s32.totalorder %v649, 0
        %vm766 = vcmp.ne.s32.totalorder %v656, 0
        %vm767 = vcmp.ne.s32.totalorder %v663, 0
        %vm768 = vcmp.ne.s32.totalorder %v670, 0
        %vm769 = vcmp.ne.s32.totalorder %v677, 0
        %vm770 = vcmp.ne.s32.totalorder %v684, 0
        %vm771 = vcmp.ne.s32.totalorder %v691, 0
        %vm772 = vcmp.ne.s32.totalorder %v698, 0
        %vm773 = vcmp.ne.s32.totalorder %v705, 0
        %vm774 = vcmp.ne.s32.totalorder %v712, 0
        %vm775 = vcmp.ne.s32.totalorder %v719, 0
        %vm776 = vcmp.ne.s32.totalorder %v726, 0
        %vm777 = vcmp.ne.s32.totalorder %v733, 0
        %vm778 = vcmp.ne.s32.totalorder %v740, 0
        %vm779 = vcmp.ne.s32.totalorder %v747, 0
        %vm780 = vcmp.ne.s32.totalorder %v754, 0
        %vm781 = vcmp.ne.s32.totalorder %v761, 0
        %vm782 = vcmp.lt.s32.totalorder %v628, 0
        %vm783 = vcmp.lt.s32.totalorder %v635, 0
        %vm784 = vcmp.lt.s32.totalorder %v642, 0
        %vm785 = vcmp.lt.s32.totalorder %v649, 0
        %vm786 = vcmp.lt.s32.totalorder %v656, 0
        %vm787 = vcmp.lt.s32.totalorder %v663, 0
        %vm788 = vcmp.lt.s32.totalorder %v670, 0
        %vm789 = vcmp.lt.s32.totalorder %v677, 0
        %vm790 = vcmp.lt.s32.totalorder %v684, 0
        %vm791 = vcmp.lt.s32.totalorder %v691, 0
        %vm792 = vcmp.lt.s32.totalorder %v698, 0
        %vm793 = vcmp.lt.s32.totalorder %v705, 0
        %vm794 = vcmp.lt.s32.totalorder %v712, 0
        %vm795 = vcmp.lt.s32.totalorder %v719, 0
        %vm796 = vcmp.lt.s32.totalorder %v726, 0
        %vm797 = vcmp.lt.s32.totalorder %v733, 0
        %vm798 = vcmp.lt.s32.totalorder %v740, 0
        %vm799 = vcmp.lt.s32.totalorder %v747, 0
        %vm800 = vcmp.lt.s32.totalorder %v754, 0
        %vm801 = vcmp.lt.s32.totalorder %v761, 0
        %vm802 = vmand %vm782, %vm762
        %vm803 = vmand %vm783, %vm763
        %vm804 = vmand %vm784, %vm764
        %vm805 = vmand %vm785, %vm765
        %vm806 = vmand %vm786, %vm766
        %vm807 = vmand %vm787, %vm767
        %vm808 = vmand %vm788, %vm768
        %vm809 = vmand %vm789, %vm769
        %vm810 = vmand %vm790, %vm770
        %vm811 = vmand %vm791, %vm771
        %vm812 = vmand %vm792, %vm772
        %vm813 = vmand %vm793, %vm773
        %vm814 = vmand %vm794, %vm774
        %vm815 = vmand %vm795, %vm775
        %vm816 = vmand %vm796, %vm776
        %vm817 = vmand %vm797, %vm777
        %vm818 = vmand %vm798, %vm778
        %vm819 = vmand %vm799, %vm779
        %vm820 = vmand %vm800, %vm780
        %vm821 = vmand %vm801, %vm781
        %v822 = vadd.s32 %v628, 16
        %v823 = vadd.s32 %v635, 16
        %v824 = vadd.s32 %v642, 16
        %v825 = vadd.s32 %v649, 16
        %v826 = vadd.s32 %v656, 16
        %v827 = vadd.s32 %v663, 16
        %v828 = vadd.s32 %v670, 16
        %v829 = vadd.s32 %v677, 16
        %v830 = vadd.s32 %v684, 16
        %v831 = vadd.s32 %v691, 16
        %v832 = vadd.s32 %v698, 16
        %v833 = vadd.s32 %v705, 16
        %v834 = vadd.s32 %v712, 16
        %v835 = vadd.s32 %v719, 16
        %v836 = vadd.s32 %v726, 16
        %v837 = vadd.s32 %v733, 16
        %v838 = vadd.s32 %v740, 16
        %v839 = vadd.s32 %v747, 16
        %v840 = vadd.s32 %v754, 16
        %v841 = vadd.s32 %v761, 16
        %v842 = vsel %vm802, %v822, %v628
        %v843 = vsel %vm803, %v823, %v635
        %v844 = vsel %vm804, %v824, %v642
        %v845 = vsel %vm805, %v825, %v649
        %v846 = vsel %vm806, %v826, %v656
        %v847 = vsel %vm807, %v827, %v663
        %v848 = vsel %vm808, %v828, %v670
        %v849 = vsel %vm809, %v829, %v677
        %v850 = vsel %vm810, %v830, %v684
        %v851 = vsel %vm811, %v831, %v691
        %v852 = vsel %vm812, %v832, %v698
        %v853 = vsel %vm813, %v833, %v705
        %v854 = vsel %vm814, %v834, %v712
        %v855 = vsel %vm815, %v835, %v719
        %v856 = vsel %vm816, %v836, %v726
        %v857 = vsel %vm817, %v837, %v733
        %v858 = vsel %vm818, %v838, %v740
        %v859 = vsel %vm819, %v839, %v747
        %v860 = vsel %vm820, %v840, %v754
        %v861 = vsel %vm821, %v841, %v761
        %vm862 = vcmp.eq.s32.totalorder %v842, 0
        %vm863 = vcmp.eq.s32.totalorder %v843, 0
        %vm864 = vcmp.eq.s32.totalorder %v844, 0
        %vm865 = vcmp.eq.s32.totalorder %v845, 0
        %vm866 = vcmp.eq.s32.totalorder %v846, 0
        %vm867 = vcmp.eq.s32.totalorder %v847, 0
        %vm868 = vcmp.eq.s32.totalorder %v848, 0
        %vm869 = vcmp.eq.s32.totalorder %v849, 0
        %vm870 = vcmp.eq.s32.totalorder %v850, 0
        %vm871 = vcmp.eq.s32.totalorder %v851, 0
        %vm872 = vcmp.eq.s32.totalorder %v852, 0
        %vm873 = vcmp.eq.s32.totalorder %v853, 0
        %vm874 = vcmp.eq.s32.totalorder %v854, 0
        %vm875 = vcmp.eq.s32.totalorder %v855, 0
        %vm876 = vcmp.eq.s32.totalorder %v856, 0
        %vm877 = vcmp.eq.s32.totalorder %v857, 0
        %vm878 = vcmp.eq.s32.totalorder %v858, 0
        %vm879 = vcmp.eq.s32.totalorder %v859, 0
        %vm880 = vcmp.eq.s32.totalorder %v860, 0
        %vm881 = vcmp.eq.s32.totalorder %v861, 0
        %v882 = vrot.slane %v581, 7
        %v883 = vrot.slane %v582, 7
        %v884 = vrot.slane %v583, 7
        %v885 = vrot.slane %v584, 7
        %v886 = vrot.slane %v585, 7
        %v887 = vrot.slane %v586, 7
        %v888 = vrot.slane %v587, 7
        %v889 = vrot.slane %v588, 7
        %v890 = vrot.slane %v589, 7
        %v891 = vrot.slane %v590, 7
        %v892 = vrot.slane %v591, 7
        %v893 = vrot.slane %v592, 7
        %v894 = vrot.slane %v593, 7
        %v895 = vrot.slane %v594, 7
        %v896 = vrot.slane %v595, 7
        %v897 = vrot.slane %v596, 7
        %v898 = vrot.slane %v597, 7
        %v899 = vrot.slane %v598, 7
        %v900 = vrot.slane %v599, 7
        %v901 = vrot.slane %v600, 7
        %vm902 = vcmp.lt.s32.totalorder %v602, 1
        %v903 = vsel %vm902, %v900, %v901
        %v904 = vsel %vm902, %v899, %v900
        %v905 = vsel %vm902, %v898, %v899
        %v906 = vsel %vm902, %v897, %v898
        %v907 = vsel %vm902, %v896, %v897
        %v908 = vsel %vm902, %v895, %v896
        %v909 = vsel %vm902, %v894, %v895
        %v910 = vsel %vm902, %v893, %v894
        %v911 = vsel %vm902, %v892, %v893
        %v912 = vsel %vm902, %v891, %v892
        %v913 = vsel %vm902, %v890, %v891
        %v914 = vsel %vm902, %v889, %v890
        %v915 = vsel %vm902, %v888, %v889
        %v916 = vsel %vm902, %v887, %v888
        %v917 = vsel %vm902, %v886, %v887
        %v918 = vsel %vm902, %v885, %v886
        %v919 = vsel %vm902, %v884, %v885
        %v920 = vsel %vm902, %v883, %v884
        %v921 = vsel %vm902, %v882, %v883
        %v922 = vsel %vm902, %v901, %v882
        %v923 = vsel %vm862, 1, 0
        %v924 = vsel %vm863, 1, 0
        %v925 = vsel %vm864, 1, 0
        %v926 = vsel %vm865, 1, 0
        %v927 = vsel %vm866, 1, 0
        %v928 = vsel %vm867, 1, 0
        %v929 = vsel %vm868, 1, 0
        %v930 = vsel %vm869, 1, 0
        %v931 = vsel %vm870, 1, 0
        %v932 = vsel %vm871, 1, 0
        %v933 = vsel %vm872, 1, 0
        %v934 = vsel %vm873, 1, 0
        %v935 = vsel %vm874, 1, 0
        %v936 = vsel %vm875, 1, 0
        %v937 = vsel %vm876, 1, 0
        %v938 = vsel %vm877, 1, 0
        %v939 = vsel %vm878, 1, 0
        %v940 = vsel %vm879, 1, 0
        %v941 = vsel %vm880, 1, 0
        %v942 = vsel %vm881, 1, 0
        %vm943 = vcmp.eq.s32.totalorder %v923, 1
        %vm944 = vcmp.eq.s32.totalorder %v924, 1
        %vm945 = vcmp.eq.s32.totalorder %v925, 1
        %vm946 = vcmp.eq.s32.totalorder %v926, 1
        %vm947 = vcmp.eq.s32.totalorder %v927, 1
        %vm948 = vcmp.eq.s32.totalorder %v928, 1
        %vm949 = vcmp.eq.s32.totalorder %v929, 1
        %vm950 = vcmp.eq.s32.totalorder %v930, 1
        %vm951 = vcmp.eq.s32.totalorder %v931, 1
        %vm952 = vcmp.eq.s32.totalorder %v932, 1
        %vm953 = vcmp.eq.s32.totalorder %v933, 1
        %vm954 = vcmp.eq.s32.totalorder %v934, 1
        %vm955 = vcmp.eq.s32.totalorder %v935, 1
        %vm956 = vcmp.eq.s32.totalorder %v936, 1
        %vm957 = vcmp.eq.s32.totalorder %v937, 1
        %vm958 = vcmp.eq.s32.totalorder %v938, 1
        %vm959 = vcmp.eq.s32.totalorder %v939, 1
        %vm960 = vcmp.eq.s32.totalorder %v940, 1
        %vm961 = vcmp.eq.s32.totalorder %v941, 1
        %vm962 = vcmp.eq.s32.totalorder %v942, 1
        %v963 = vsel %vm943, 0.0, %v922
        %v964 = vsel %vm944, 0.0, %v921
        %v965 = vsel %vm945, 0.0, %v920
        %v966 = vsel %vm946, 0.0, %v919
        %v967 = vsel %vm947, 0.0, %v918
        %v968 = vsel %vm948, 0.0, %v917
        %v969 = vsel %vm949, 0.0, %v916
        %v970 = vsel %vm950, 0.0, %v915
        %v971 = vsel %vm951, 0.0, %v914
        %v972 = vsel %vm952, 0.0, %v913
        %v973 = vsel %vm953, 0.0, %v912
        %v974 = vsel %vm954, 0.0, %v911
        %v975 = vsel %vm955, 0.0, %v910
        %v976 = vsel %vm956, 0.0, %v909
        %v977 = vsel %vm957, 0.0, %v908
        %v978 = vsel %vm958, 0.0, %v907
        %v979 = vsel %vm959, 0.0, %v906
        %v980 = vsel %vm960, 0.0, %v905
        %v981 = vsel %vm961, 0.0, %v904
        %v982 = vsel %vm962, 0.0, %v903
        %vm983 = vcmp.eq.s32.totalorder %v842, 15
        %vm984 = vcmp.eq.s32.totalorder %v843, 15
        %vm985 = vcmp.eq.s32.totalorder %v844, 15
        %vm986 = vcmp.eq.s32.totalorder %v845, 15
        %vm987 = vcmp.eq.s32.totalorder %v846, 15
        %vm988 = vcmp.eq.s32.totalorder %v847, 15
        %vm989 = vcmp.eq.s32.totalorder %v848, 15
        %vm990 = vcmp.eq.s32.totalorder %v849, 15
        %vm991 = vcmp.eq.s32.totalorder %v850, 15
        %vm992 = vcmp.eq.s32.totalorder %v851, 15
        %vm993 = vcmp.eq.s32.totalorder %v852, 15
        %vm994 = vcmp.eq.s32.totalorder %v853, 15
        %vm995 = vcmp.eq.s32.totalorder %v854, 15
        %vm996 = vcmp.eq.s32.totalorder %v855, 15
        %vm997 = vcmp.eq.s32.totalorder %v856, 15
        %vm998 = vcmp.eq.s32.totalorder %v857, 15
        %vm999 = vcmp.eq.s32.totalorder %v858, 15
        %vm1000 = vcmp.eq.s32.totalorder %v859, 15
        %vm1001 = vcmp.eq.s32.totalorder %v860, 15
        %vm1002 = vcmp.eq.s32.totalorder %v861, 15
        %v1003 = vrot.slane %v581, 1
        %v1004 = vrot.slane %v582, 1
        %v1005 = vrot.slane %v583, 1
        %v1006 = vrot.slane %v584, 1
        %v1007 = vrot.slane %v585, 1
        %v1008 = vrot.slane %v586, 1
        %v1009 = vrot.slane %v587, 1
        %v1010 = vrot.slane %v588, 1
        %v1011 = vrot.slane %v589, 1
        %v1012 = vrot.slane %v590, 1
        %v1013 = vrot.slane %v591, 1
        %v1014 = vrot.slane %v592, 1
        %v1015 = vrot.slane %v593, 1
        %v1016 = vrot.slane %v594, 1
        %v1017 = vrot.slane %v595, 1
        %v1018 = vrot.slane %v596, 1
        %v1019 = vrot.slane %v597, 1
        %v1020 = vrot.slane %v598, 1
        %v1021 = vrot.slane %v599, 1
        %v1022 = vrot.slane %v600, 1
        %vm1023 = vcmp.lt.s32.totalorder %v602, 7
        %v1024 = vsel %vm1023, %v1021, %v1022
        %v1025 = vsel %vm1023, %v1020, %v1021
        %v1026 = vsel %vm1023, %v1019, %v1020
        %v1027 = vsel %vm1023, %v1018, %v1019
        %v1028 = vsel %vm1023, %v1017, %v1018
        %v1029 = vsel %vm1023, %v1016, %v1017
        %v1030 = vsel %vm1023, %v1015, %v1016
        %v1031 = vsel %vm1023, %v1014, %v1015
        %v1032 = vsel %vm1023, %v1013, %v1014
        %v1033 = vsel %vm1023, %v1012, %v1013
        %v1034 = vsel %vm1023, %v1011, %v1012
        %v1035 = vsel %vm1023, %v1010, %v1011
        %v1036 = vsel %vm1023, %v1009, %v1010
        %v1037 = vsel %vm1023, %v1008, %v1009
        %v1038 = vsel %vm1023, %v1007, %v1008
        %v1039 = vsel %vm1023, %v1006, %v1007
        %v1040 = vsel %vm1023, %v1005, %v1006
        %v1041 = vsel %vm1023, %v1004, %v1005
        %v1042 = vsel %vm1023, %v1003, %v1004
        %v1043 = vsel %vm1023, %v1022, %v1003
        %v1044 = vsel %vm983, 1, 0
        %v1045 = vsel %vm984, 1, 0
        %v1046 = vsel %vm985, 1, 0
        %v1047 = vsel %vm986, 1, 0
        %v1048 = vsel %vm987, 1, 0
        %v1049 = vsel %vm988, 1, 0
        %v1050 = vsel %vm989, 1, 0
        %v1051 = vsel %vm990, 1, 0
        %v1052 = vsel %vm991, 1, 0
        %v1053 = vsel %vm992, 1, 0
        %v1054 = vsel %vm993, 1, 0
        %v1055 = vsel %vm994, 1, 0
        %v1056 = vsel %vm995, 1, 0
        %v1057 = vsel %vm996, 1, 0
        %v1058 = vsel %vm997, 1, 0
        %v1059 = vsel %vm998, 1, 0
        %v1060 = vsel %vm999, 1, 0
        %v1061 = vsel %vm1000, 1, 0
        %v1062 = vsel %vm1001, 1, 0
        %v1063 = vsel %vm1002, 1, 0
        %vm1064 = vcmp.eq.s32.totalorder %v1044, 1
        %vm1065 = vcmp.eq.s32.totalorder %v1045, 1
        %vm1066 = vcmp.eq.s32.totalorder %v1046, 1
        %vm1067 = vcmp.eq.s32.totalorder %v1047, 1
        %vm1068 = vcmp.eq.s32.totalorder %v1048, 1
        %vm1069 = vcmp.eq.s32.totalorder %v1049, 1
        %vm1070 = vcmp.eq.s32.totalorder %v1050, 1
        %vm1071 = vcmp.eq.s32.totalorder %v1051, 1
        %vm1072 = vcmp.eq.s32.totalorder %v1052, 1
        %vm1073 = vcmp.eq.s32.totalorder %v1053, 1
        %vm1074 = vcmp.eq.s32.totalorder %v1054, 1
        %vm1075 = vcmp.eq.s32.totalorder %v1055, 1
        %vm1076 = vcmp.eq.s32.totalorder %v1056, 1
        %vm1077 = vcmp.eq.s32.totalorder %v1057, 1
        %vm1078 = vcmp.eq.s32.totalorder %v1058, 1
        %vm1079 = vcmp.eq.s32.totalorder %v1059, 1
        %vm1080 = vcmp.eq.s32.totalorder %v1060, 1
        %vm1081 = vcmp.eq.s32.totalorder %v1061, 1
        %vm1082 = vcmp.eq.s32.totalorder %v1062, 1
        %vm1083 = vcmp.eq.s32.totalorder %v1063, 1
        %v1084 = vsel %vm1064, 0.0, %v1042
        %v1085 = vsel %vm1065, 0.0, %v1041
        %v1086 = vsel %vm1066, 0.0, %v1040
        %v1087 = vsel %vm1067, 0.0, %v1039
        %v1088 = vsel %vm1068, 0.0, %v1038
        %v1089 = vsel %vm1069, 0.0, %v1037
        %v1090 = vsel %vm1070, 0.0, %v1036
        %v1091 = vsel %vm1071, 0.0, %v1035
        %v1092 = vsel %vm1072, 0.0, %v1034
        %v1093 = vsel %vm1073, 0.0, %v1033
        %v1094 = vsel %vm1074, 0.0, %v1032
        %v1095 = vsel %vm1075, 0.0, %v1031
        %v1096 = vsel %vm1076, 0.0, %v1030
        %v1097 = vsel %vm1077, 0.0, %v1029
        %v1098 = vsel %vm1078, 0.0, %v1028
        %v1099 = vsel %vm1079, 0.0, %v1027
        %v1100 = vsel %vm1080, 0.0, %v1026
        %v1101 = vsel %vm1081, 0.0, %v1025
        %v1102 = vsel %vm1082, 0.0, %v1024
        %v1103 = vsel %vm1083, 0.0, %v1043
        %v1104 = vpack.c.bf16 %v964, %v963
        %v1105 = vpack.c.bf16 %v966, %v965
        %v1106 = vpack.c.bf16 %v968, %v967
        %v1107 = vpack.c.bf16 %v970, %v969
        %v1108 = vpack.c.bf16 %v972, %v971
        %v1109 = vpack.c.bf16 %v974, %v973
        %v1110 = vpack.c.bf16 %v976, %v975
        %v1111 = vpack.c.bf16 %v978, %v977
        %v1112 = vpack.c.bf16 %v980, %v979
        %v1113 = vpack.c.bf16 %v982, %v981
        %1114 = vst [vmem:[#allocation4] sm:$0xff] %v1104
        %1115 = vst [vmem:[#allocation4 + $0x18] sm:$0xff] %v1105
        %1116 = vst [vmem:[#allocation4 + $0x30] sm:$0xff] %v1106
        %1117 = vst [vmem:[#allocation4 + $0x48] sm:$0xff] %v1107
        %1118 = vst [vmem:[#allocation4 + $0x60] sm:$0xff] %v1108
        %1119 = vst [vmem:[#allocation4 + $0x78] sm:$0xff] %v1109
        %1120 = vst [vmem:[#allocation4 + $0x90] sm:$0xff] %v1110
        %1121 = vst [vmem:[#allocation4 + $0xa8] sm:$0xff] %v1111
        %1122 = vst [vmem:[#allocation4 + $0xc0] sm:$0xff] %v1112
        %1123 = vst [vmem:[#allocation4 + $0xd8] sm:$0xff] %v1113
        %v1124 = vpack.c.bf16 %v582, %v581
        %v1125 = vpack.c.bf16 %v584, %v583
        %v1126 = vpack.c.bf16 %v586, %v585
        %v1127 = vpack.c.bf16 %v588, %v587
        %v1128 = vpack.c.bf16 %v590, %v589
        %v1129 = vpack.c.bf16 %v592, %v591
        %v1130 = vpack.c.bf16 %v594, %v593
        %v1131 = vpack.c.bf16 %v596, %v595
        %v1132 = vpack.c.bf16 %v598, %v597
        %v1133 = vpack.c.bf16 %v600, %v599
        %1134 = vst [vmem:[#allocation4 + $0x8] sm:$0xff] %v1124
        %1135 = vst [vmem:[#allocation4 + $0x20] sm:$0xff] %v1125
        %1136 = vst [vmem:[#allocation4 + $0x38] sm:$0xff] %v1126
        %1137 = vst [vmem:[#allocation4 + $0x50] sm:$0xff] %v1127
        %1138 = vst [vmem:[#allocation4 + $0x68] sm:$0xff] %v1128
        %1139 = vst [vmem:[#allocation4 + $0x80] sm:$0xff] %v1129
        %1140 = vst [vmem:[#allocation4 + $0x98] sm:$0xff] %v1130
        %1141 = vst [vmem:[#allocation4 + $0xb0] sm:$0xff] %v1131
        %1142 = vst [vmem:[#allocation4 + $0xc8] sm:$0xff] %v1132
        %1143 = vst [vmem:[#allocation4 + $0xe0] sm:$0xff] %v1133
        %v1144 = vpack.c.bf16 %v1085, %v1084
        %v1145 = vpack.c.bf16 %v1087, %v1086
        %v1146 = vpack.c.bf16 %v1089, %v1088
        %v1147 = vpack.c.bf16 %v1091, %v1090
        %v1148 = vpack.c.bf16 %v1093, %v1092
        %v1149 = vpack.c.bf16 %v1095, %v1094
        %v1150 = vpack.c.bf16 %v1097, %v1096
        %v1151 = vpack.c.bf16 %v1099, %v1098
        %v1152 = vpack.c.bf16 %v1101, %v1100
        %v1153 = vpack.c.bf16 %v1103, %v1102
        %1154 = vst [vmem:[#allocation4 + $0x10] sm:$0xff] %v1144
        %1155 = vst [vmem:[#allocation4 + $0x28] sm:$0xff] %v1145
        %1156 = vst [vmem:[#allocation4 + $0x40] sm:$0xff] %v1146
        %1157 = vst [vmem:[#allocation4 + $0x58] sm:$0xff] %v1147
        %1158 = vst [vmem:[#allocation4 + $0x70] sm:$0xff] %v1148
        %1159 = vst [vmem:[#allocation4 + $0x88] sm:$0xff] %v1149
        %1160 = vst [vmem:[#allocation4 + $0xa0] sm:$0xff] %v1150
        %1161 = vst [vmem:[#allocation4 + $0xb8] sm:$0xff] %v1151
        %1162 = vst [vmem:[#allocation4 + $0xd0] sm:$0xff] %v1152
        %1163 = vst [vmem:[#allocation4 + $0xe8] sm:$0xff] %v1153
        %p1164 = scmp.eq.s32.totalorder %s26, 0
        // Predicated region
        $region49: #{tpu_custom_call.1} parent=35 // pred_check
          %p1165 = pneg %p1164
        $region50: #{tpu_custom_call.1} parent=35 // pred_check_branch
          %1167 = sbr.rel (%p1165) target = $region52
        $region51: #{tpu_custom_call.1} parent=35 // pred_region
          %1168 = vst [vmem:[#allocation4] sm:$0xff] 0
          %1169 = vst [vmem:[#allocation4 + $0x8] sm:$0xff] 0
          %1170 = vst [vmem:[#allocation4 + $0x10] sm:$0xff] 0
        $region52: #{tpu_custom_call.1} parent=35 // pred_fallthru
          _
        %p1171 = scmp.eq.s32.totalorder %s26, 1
        // Predicated region
        $region53: #{tpu_custom_call.1} parent=35 // pred_check
          %p1172 = pneg %p1171
        $region54: #{tpu_custom_call.1} parent=35 // pred_check_branch
          %1174 = sbr.rel (%p1172) target = $region56
        $region55: #{tpu_custom_call.1} parent=35 // pred_region
          %1175 = vst [vmem:[#allocation4 + $0xd8] sm:$0xff] 0
          %1176 = vst [vmem:[#allocation4 + $0xe0] sm:$0xff] 0
          %1177 = vst [vmem:[#allocation4 + $0xe8] sm:$0xff] 0
        $region56: #{tpu_custom_call.1} parent=35 // pred_fallthru
          _
        %v1178 = vld [vmem:[#allocation4] sm:$0xff]
        %v1179 = vld [vmem:[#allocation4 + $0x8] sm:$0xff]
        %v1180 = vld [vmem:[#allocation4 + $0x10] sm:$0xff]
        %v1181 = vld [vmem:[#allocation4 + $0x18] sm:$0xff]
        %v1182 = vld [vmem:[#allocation4 + $0x20] sm:$0xff]
        %v1183 = vld [vmem:[#allocation4 + $0x28] sm:$0xff]
        %v1184 = vld [vmem:[#allocation4 + $0x30] sm:$0xff]
        %v1185 = vld [vmem:[#allocation4 + $0x38] sm:$0xff]
        %v1186 = vld [vmem:[#allocation4 + $0x40] sm:$0xff]
        %v1187 = vld [vmem:[#allocation4 + $0x48] sm:$0xff]
        %v1188 = vld [vmem:[#allocation4 + $0x50] sm:$0xff]
        %v1189 = vld [vmem:[#allocation4 + $0x58] sm:$0xff]
        %v1190 = vld [vmem:[#allocation4 + $0x60] sm:$0xff]
        %v1191 = vld [vmem:[#allocation4 + $0x68] sm:$0xff]
        %v1192 = vld [vmem:[#allocation4 + $0x70] sm:$0xff]
        %v1193 = vld [vmem:[#allocation4 + $0x78] sm:$0xff]
        %v1194 = vld [vmem:[#allocation4 + $0x80] sm:$0xff]
        %v1195 = vld [vmem:[#allocation4 + $0x88] sm:$0xff]
        %v1196 = vld [vmem:[#allocation4 + $0x90] sm:$0xff]
        %v1197 = vld [vmem:[#allocation4 + $0x98] sm:$0xff]
        %v1198 = vld [vmem:[#allocation4 + $0xa0] sm:$0xff]
        %v1199 = vld [vmem:[#allocation4 + $0xa8] sm:$0xff]
        %v1200 = vld [vmem:[#allocation4 + $0xb0] sm:$0xff]
        %v1201 = vld [vmem:[#allocation4 + $0xb8] sm:$0xff]
        %v1202 = vld [vmem:[#allocation8] sm:$0xf]
        %v1203 = vld [vmem:[#allocation8 + $0x4] sm:$0xf]
        %v1204 = vld [vmem:[#allocation8 + $0x8] sm:$0xf]
        %v1205 = vld [vmem:[#allocation8 + $0xc] sm:$0xf]
        %v1206 = vld [vmem:[#allocation8 + $0x10] sm:$0xf]
        %v1207 = vld [vmem:[#allocation8 + $0x14] sm:$0xf]
        %v1208 = vld [vmem:[#allocation8 + $0x18] sm:$0xf]
        %v1209 = vld [vmem:[#allocation8 + $0x1c] sm:$0xf]
        %v1210 = vld [vmem:[#allocation8 + $0x20] sm:$0xf]
        %v1211 = vld [vmem:[#allocation8 + $0x24] sm:$0xf]
        %v1212 = vld [vmem:[#allocation8 + $0x28] sm:$0xf]
        %v1213 = vld [vmem:[#allocation8 + $0x2c] sm:$0xf]
        %v1214 = vld [vmem:[#allocation8 + $0x30] sm:$0xf]
        %v1215 = vld [vmem:[#allocation8 + $0x34] sm:$0xf]
        %v1216 = vld [vmem:[#allocation8 + $0x38] sm:$0xf]
        %v1217 = vld [vmem:[#allocation8 + $0x3c] sm:$0xf]
        %v1218 = vld [vmem:[#allocation8 + $0x40] sm:$0xf]
        %v1219 = vld [vmem:[#allocation8 + $0x44] sm:$0xf]
        %v1220 = vld [vmem:[#allocation8 + $0x48] sm:$0xf]
        %v1221 = vld [vmem:[#allocation8 + $0x4c] sm:$0xf]
        %v1222 = vld [vmem:[#allocation8 + $0x50] sm:$0xf]
        %v1223 = vld [vmem:[#allocation8 + $0x54] sm:$0xf]
        %v1224 = vld [vmem:[#allocation8 + $0x58] sm:$0xf]
        %v1225 = vld [vmem:[#allocation8 + $0x5c] sm:$0xf]
        %v1226 = vld [vmem:[#allocation8 + $0x60] sm:$0xf]
        %v1227 = vld [vmem:[#allocation8 + $0x64] sm:$0xf]
        %v1228 = vld [vmem:[#allocation8 + $0x68] sm:$0xf]
        %v1229 = vld [vmem:[#allocation8 + $0x6c] sm:$0xf]
        %v1230 = vld [vmem:[#allocation8 + $0x70] sm:$0xf]
        %v1231 = vld [vmem:[#allocation8 + $0x74] sm:$0xf]
        %v1232 = vld [vmem:[#allocation8 + $0x78] sm:$0xf]
        %v1233 = vld [vmem:[#allocation8 + $0x7c] sm:$0xf]
        %v1234 = vld [vmem:[#allocation8 + $0x80] sm:$0xf]
        %v1235 = vld [vmem:[#allocation8 + $0x84] sm:$0xf]
        %v1236 = vld [vmem:[#allocation8 + $0x88] sm:$0xf]
        %v1237 = vld [vmem:[#allocation8 + $0x8c] sm:$0xf]
        %v1238 = vld [vmem:[#allocation8 + $0x90] sm:$0xf]
        %v1239 = vld [vmem:[#allocation8 + $0x94] sm:$0xf]
        %v1240 = vld [vmem:[#allocation8 + $0x98] sm:$0xf]
        %v1241 = vld [vmem:[#allocation8 + $0x9c] sm:$0xf]
        %v1242 = vld [vmem:[#allocation8 + $0xa0] sm:$0xf]
        %v1243 = vld [vmem:[#allocation8 + $0xa4] sm:$0xf]
        %v1244 = vld [vmem:[#allocation8 + $0xa8] sm:$0xf]
        %v1245 = vld [vmem:[#allocation8 + $0xac] sm:$0xf]
        %v1246 = vld [vmem:[#allocation8 + $0xb0] sm:$0xf]
        %v1247 = vld [vmem:[#allocation8 + $0xb4] sm:$0xf]
        %v1248 = vld [vmem:[#allocation8 + $0xb8] sm:$0xf]
        %v1249 = vld [vmem:[#allocation8 + $0xbc] sm:$0xf]
        %v1250 = vld [vmem:[#allocation4 + $0xc0] sm:$0xff]
        %v1251 = vld [vmem:[#allocation4 + $0xc8] sm:$0xff]
        %v1252 = vld [vmem:[#allocation4 + $0xd0] sm:$0xff]
        %s1253 = scalar_lea.vmem [#allocation8], 192
        %v1254 = vld [vmem:[%s1253] sm:$0xf]
        %v1255 = vld [vmem:[%s1253 + $0x4] sm:$0xf]
        %v1256 = vld [vmem:[%s1253 + $0x8] sm:$0xf]
        %v1257 = vld [vmem:[%s1253 + $0xc] sm:$0xf]
        %v1258 = vld [vmem:[%s1253 + $0x10] sm:$0xf]
        %v1259 = vld [vmem:[%s1253 + $0x14] sm:$0xf]
        %v1260 = vld [vmem:[%s1253 + $0x18] sm:$0xf]
        %v1261 = vld [vmem:[%s1253 + $0x1c] sm:$0xf]
        %v1262 = vld [vmem:[%s1253 + $0x20] sm:$0xf]
        %v1263 = vld [vmem:[%s1253 + $0x24] sm:$0xf]
        %v1264 = vld [vmem:[%s1253 + $0x28] sm:$0xf]
        %v1265 = vld [vmem:[%s1253 + $0x2c] sm:$0xf]
        %v1266 = vld [vmem:[%s1253 + $0x30] sm:$0xf]
        %v1267 = vld [vmem:[%s1253 + $0x34] sm:$0xf]
        %v1268 = vld [vmem:[%s1253 + $0x38] sm:$0xf]
        %v1269 = vld [vmem:[%s1253 + $0x3c] sm:$0xf]
        %v1270 = vld [vmem:[%s1253 + $0x40] sm:$0xf]
        %v1271 = vld [vmem:[%s1253 + $0x44] sm:$0xf]
        %v1272 = vld [vmem:[%s1253 + $0x48] sm:$0xf]
        %v1273 = vld [vmem:[%s1253 + $0x4c] sm:$0xf]
        %v1274 = vld [vmem:[%s1253 + $0x50] sm:$0xf]
        %v1275 = vld [vmem:[%s1253 + $0x54] sm:$0xf]
        %v1276 = vld [vmem:[%s1253 + $0x58] sm:$0xf]
        %v1277 = vld [vmem:[%s1253 + $0x5c] sm:$0xf]
        %v1278 = vld [vmem:[%s1253 + $0x60] sm:$0xf]
        %v1279 = vld [vmem:[%s1253 + $0x64] sm:$0xf]
        %v1280 = vld [vmem:[%s1253 + $0x68] sm:$0xf]
        %v1281 = vld [vmem:[%s1253 + $0x6c] sm:$0xf]
        %v1282 = vld [vmem:[%s1253 + $0x70] sm:$0xf]
        %v1283 = vld [vmem:[%s1253 + $0x74] sm:$0xf]
        %v1284 = vld [vmem:[%s1253 + $0x78] sm:$0xf]
        %v1285 = vld [vmem:[%s1253 + $0x7c] sm:$0xf]
        %v1286 = vld [vmem:[%s1253 + $0x80] sm:$0xf]
        %v1287 = vld [vmem:[%s1253 + $0x84] sm:$0xf]
        %v1288 = vld [vmem:[%s1253 + $0x88] sm:$0xf]
        %v1289 = vld [vmem:[%s1253 + $0x8c] sm:$0xf]
        %v1290 = vld [vmem:[%s1253 + $0x90] sm:$0xf]
        %v1291 = vld [vmem:[%s1253 + $0x94] sm:$0xf]
        %v1292 = vld [vmem:[%s1253 + $0x98] sm:$0xf]
        %v1293 = vld [vmem:[%s1253 + $0x9c] sm:$0xf]
        %v1294 = vld [vmem:[%s1253 + $0xa0] sm:$0xf]
        %v1295 = vld [vmem:[%s1253 + $0xa4] sm:$0xf]
        %v1296 = vld [vmem:[%s1253 + $0xa8] sm:$0xf]
        %v1297 = vld [vmem:[%s1253 + $0xac] sm:$0xf]
        %v1298 = vld [vmem:[%s1253 + $0xb0] sm:$0xf]
        %v1299 = vld [vmem:[%s1253 + $0xb4] sm:$0xf]
        %v1300 = vld [vmem:[%s1253 + $0xb8] sm:$0xf]
        %v1301 = vld [vmem:[%s1253 + $0xbc] sm:$0xf]
        %v1350 = vunpack.c.l.b16 %v1254
        %v1351 = vunpack.c.l.b16 %v1255
        %v1352 = vunpack.c.l.b16 %v1256
        %v1353 = vunpack.c.l.b16 %v1257
        %v1354 = vunpack.c.l.b16 %v1258
        %v1355 = vunpack.c.l.b16 %v1259
        %v1356 = vunpack.c.l.b16 %v1260
        %v1357 = vunpack.c.l.b16 %v1261
        %v1358 = vunpack.c.l.b16 %v1262
        %v1359 = vunpack.c.l.b16 %v1263
        %v1360 = vunpack.c.l.b16 %v1264
        %v1361 = vunpack.c.l.b16 %v1265
        %v1362 = vunpack.c.l.b16 %v1266
        %v1363 = vunpack.c.l.b16 %v1267
        %v1364 = vunpack.c.l.b16 %v1268
        %v1365 = vunpack.c.l.b16 %v1269
        %v1366 = vunpack.c.l.b16 %v1270
        %v1367 = vunpack.c.l.b16 %v1271
        %v1368 = vunpack.c.l.b16 %v1272
        %v1369 = vunpack.c.l.b16 %v1273
        %v1370 = vunpack.c.l.b16 %v1274
        %v1371 = vunpack.c.l.b16 %v1275
        %v1372 = vunpack.c.l.b16 %v1276
        %v1373 = vunpack.c.l.b16 %v1277
        %v1374 = vunpack.c.l.b16 %v1278
        %v1375 = vunpack.c.l.b16 %v1279
        %v1376 = vunpack.c.l.b16 %v1280
        %v1377 = vunpack.c.l.b16 %v1281
        %v1378 = vunpack.c.l.b16 %v1282
        %v1379 = vunpack.c.l.b16 %v1283
        %v1380 = vunpack.c.l.b16 %v1284
        %v1381 = vunpack.c.l.b16 %v1285
        %v1382 = vunpack.c.l.b16 %v1286
        %v1383 = vunpack.c.l.b16 %v1287
        %v1384 = vunpack.c.l.b16 %v1288
        %v1385 = vunpack.c.l.b16 %v1289
        %v1386 = vunpack.c.l.b16 %v1290
        %v1387 = vunpack.c.l.b16 %v1291
        %v1388 = vunpack.c.l.b16 %v1292
        %v1389 = vunpack.c.l.b16 %v1293
        %v1390 = vunpack.c.l.b16 %v1294
        %v1391 = vunpack.c.l.b16 %v1295
        %v1392 = vunpack.c.l.b16 %v1296
        %v1393 = vunpack.c.l.b16 %v1297
        %v1394 = vunpack.c.l.b16 %v1298
        %v1395 = vunpack.c.l.b16 %v1299
        %v1396 = vunpack.c.l.b16 %v1300
        %v1397 = vunpack.c.l.b16 %v1301
        %v1398 = vpack.c.b16 %v1351, %v1350
        %v1399 = vpack.c.b16 %v1353, %v1352
        %v1400 = vpack.c.b16 %v1355, %v1354
        %v1401 = vpack.c.b16 %v1357, %v1356
        %v1402 = vpack.c.b16 %v1359, %v1358
        %v1403 = vpack.c.b16 %v1361, %v1360
        %v1404 = vpack.c.b16 %v1363, %v1362
        %v1405 = vpack.c.b16 %v1365, %v1364
        %v1406 = vpack.c.b16 %v1367, %v1366
        %v1407 = vpack.c.b16 %v1369, %v1368
        %v1408 = vpack.c.b16 %v1371, %v1370
        %v1409 = vpack.c.b16 %v1373, %v1372
        %v1410 = vpack.c.b16 %v1375, %v1374
        %v1411 = vpack.c.b16 %v1377, %v1376
        %v1412 = vpack.c.b16 %v1379, %v1378
        %v1413 = vpack.c.b16 %v1381, %v1380
        %v1414 = vpack.c.b16 %v1383, %v1382
        %v1415 = vpack.c.b16 %v1385, %v1384
        %v1416 = vpack.c.b16 %v1387, %v1386
        %v1417 = vpack.c.b16 %v1389, %v1388
        %v1418 = vpack.c.b16 %v1391, %v1390
        %v1419 = vpack.c.b16 %v1393, %v1392
        %v1420 = vpack.c.b16 %v1395, %v1394
        %v1421 = vpack.c.b16 %v1397, %v1396
        %1446 = vmatprep.subr.bf16.mxu0 0
        %1447 = vmatpush1.bf16.msra.mxu0 %v1398
        %1448 = vmatprep.subr.bf16.mxu0 0
        %1449 = vmatpush1.bf16.msra.mxu0 %v1399
        %1450 = vmatprep.subr.bf16.mxu0 0
        %1451 = vmatpush1.bf16.msra.mxu0 %v1400
        %1452 = vmatprep.subr.bf16.mxu0 0
        %1453 = vmatpush1.bf16.msra.mxu0 %v1401
        %1454 = vmatprep.subr.bf16.mxu0 0
        %1455 = vmatpush1.bf16.msra.mxu0 %v1402
        %1456 = vmatprep.subr.bf16.mxu0 0
        %1457 = vmatpush1.bf16.msra.mxu0 %v1403
        %1458 = vmatprep.subr.bf16.mxu0 0
        %1459 = vmatpush1.bf16.msra.mxu0 %v1404
        %1460 = vmatprep.subr.bf16.mxu0 0
        %1461 = vmatpush1.bf16.msra.mxu0 %v1405
        %1462 = vmatprep.subr.bf16.mxu0 0
        %1463 = vmatpush1.bf16.msra.mxu0 %v1406
        %1464 = vmatprep.subr.bf16.mxu0 0
        %1465 = vmatpush1.bf16.msra.mxu0 %v1407
        %1466 = vmatprep.subr.bf16.mxu0 0
        %1467 = vmatpush1.bf16.msra.mxu0 %v1408
        %1468 = vmatprep.subr.bf16.mxu0 0
        %1469 = vmatpush1.bf16.msra.mxu0 %v1409
        %1470 = vmatprep.subr.bf16.mxu0 0
        %1471 = vmatpush1.bf16.msra.mxu0 %v1410
        %1472 = vmatprep.subr.bf16.mxu0 0
        %1473 = vmatpush1.bf16.msra.mxu0 %v1411
        %1474 = vmatprep.subr.bf16.mxu0 0
        %1475 = vmatpush1.bf16.msra.mxu0 %v1412
        %1476 = vmatprep.subr.bf16.mxu0 0
        %1477 = vmatpush1.bf16.msra.mxu0 %v1413
        %1478 = vmatprep.mubr.bf16.mxu0 %v1182
        %1479 = vmatmul.mubr.bf16.gmra.mrb[0].mxu0 %v1181
        %v1480 = vpop.f32.mrb[0].mxu0
        %v1481 = vadd.f32 0.0, %v1480
        %v1482 = vpop.f32.mrb[0].mxu0
        %v1483 = vpop.f32.mrb[0].mxu0
        %v1484 = vadd.f32 0.0, %v1483
        %v1485 = vpop.f32.mrb[0].mxu0
        %1486 = vmatprep.mubr.bf16.mxu0 %v1185
        %1487 = vmatmul.mubr.bf16.gmra.mrb[0].mxu0 %v1184
        %v1488 = vpop.f32.mrb[0].mxu0
        %v1489 = vadd.f32 0.0, %v1488
        %v1490 = vpop.f32.mrb[0].mxu0
        %v1491 = vpop.f32.mrb[0].mxu0
        %v1492 = vadd.f32 0.0, %v1491
        %v1493 = vpop.f32.mrb[0].mxu0
        %1494 = vmatprep.mubr.bf16.mxu0 %v1188
        %1495 = vmatmul.mubr.bf16.gmra.mrb[0].mxu0 %v1187
        %v1496 = vpop.f32.mrb[0].mxu0
        %v1497 = vadd.f32 0.0, %v1496
        %v1498 = vpop.f32.mrb[0].mxu0
        %v1499 = vpop.f32.mrb[0].mxu0
        %v1500 = vadd.f32 0.0, %v1499
        %v1501 = vpop.f32.mrb[0].mxu0
        %1502 = vmatprep.mubr.bf16.mxu0 %v1191
        %1503 = vmatmul.mubr.bf16.gmra.mrb[0].mxu0 %v1190
        %v1504 = vpop.f32.mrb[0].mxu0
        %v1505 = vadd.f32 0.0, %v1504
        %v1506 = vpop.f32.mrb[0].mxu0
        %v1507 = vpop.f32.mrb[0].mxu0
        %v1508 = vadd.f32 0.0, %v1507
        %v1509 = vpop.f32.mrb[0].mxu0
        %1510 = vmatprep.mubr.bf16.mxu0 %v1194
        %1511 = vmatmul.mubr.bf16.gmra.mrb[0].mxu0 %v1193
        %v1512 = vpop.f32.mrb[0].mxu0
        %v1513 = vadd.f32 0.0, %v1512
        %v1514 = vpop.f32.mrb[0].mxu0
        %v1515 = vpop.f32.mrb[0].mxu0
        %v1516 = vadd.f32 0.0, %v1515
        %v1517 = vpop.f32.mrb[0].mxu0
        %1518 = vmatprep.mubr.bf16.mxu0 %v1197
        %1519 = vmatmul.mubr.bf16.gmra.mrb[0].mxu0 %v1196
        %v1520 = vpop.f32.mrb[0].mxu0
        %v1521 = vadd.f32 0.0, %v1520
        %v1522 = vpop.f32.mrb[0].mxu0
        %v1523 = vpop.f32.mrb[0].mxu0
        %v1524 = vadd.f32 0.0, %v1523
        %v1525 = vpop.f32.mrb[0].mxu0
        %1526 = vmatprep.mubr.bf16.mxu0 %v1200
        %1527 = vmatmul.mubr.bf16.gmra.mrb[0].mxu0 %v1199
        %v1528 = vpop.f32.mrb[0].mxu0
        %v1529 = vadd.f32 0.0, %v1528
        %v1530 = vpop.f32.mrb[0].mxu0
        %v1531 = vpop.f32.mrb[0].mxu0
        %v1532 = vadd.f32 0.0, %v1531
        %v1533 = vpop.f32.mrb[0].mxu0
        %1534 = vmatprep.mubr.bf16.mxu0 %v1251
        %1535 = vmatmul.mubr.bf16.gmra.mrb[0].mxu0 %v1250
        %v1536 = vpop.f32.mrb[0].mxu0
        %v1537 = vadd.f32 0.0, %v1536
        %v1538 = vpop.f32.mrb[0].mxu0
        %v1539 = vpop.f32.mrb[0].mxu0
        %v1540 = vadd.f32 0.0, %v1539
        %v1541 = vpop.f32.mrb[0].mxu0
        %1542 = vdwg.mxu0
        %1543 = vmatprep.subr.bf16.mxu0 0
        %1544 = vmatpush1.bf16.msra.mxu0 %v1414
        %1545 = vmatprep.subr.bf16.mxu0 0
        %1546 = vmatpush1.bf16.msra.mxu0 %v1415
        %1547 = vmatprep.subr.bf16.mxu0 0
        %1548 = vmatpush1.bf16.msra.mxu0 %v1416
        %1549 = vmatprep.subr.bf16.mxu0 0
        %1550 = vmatpush1.bf16.msra.mxu0 %v1417
        %1551 = vmatprep.subr.bf16.mxu0 0
        %1552 = vmatpush1.bf16.msra.mxu0 %v1418
        %1553 = vmatprep.subr.bf16.mxu0 0
        %1554 = vmatpush1.bf16.msra.mxu0 %v1419
        %1555 = vmatprep.subr.bf16.mxu0 0
        %1556 = vmatpush1.bf16.msra.mxu0 %v1420
        %1557 = vmatprep.subr.bf16.mxu0 0
        %1558 = vmatpush1.bf16.msra.mxu0 %v1421
        %1559 = vmatprep.subr.bf16.mxu0 0
        %1560 = vmatpush1.bf16.msra.mxu0 0
        %1561 = vmatprep.subr.bf16.mxu0 0
        %1562 = vmatpush1.bf16.msra.mxu0 0
        %1563 = vmatprep.subr.bf16.mxu0 0
        %1564 = vmatpush1.bf16.msra.mxu0 0
        %1565 = vmatprep.subr.bf16.mxu0 0
        %1566 = vmatpush1.bf16.msra.mxu0 0
        %1567 = vmatprep.subr.bf16.mxu0 0
        %1568 = vmatpush1.bf16.msra.mxu0 0
        %1569 = vmatprep.subr.bf16.mxu0 0
        %1570 = vmatpush1.bf16.msra.mxu0 0
        %1571 = vmatprep.subr.bf16.mxu0 0
        %1572 = vmatpush1.bf16.msra.mxu0 0
        %1573 = vmatprep.subr.bf16.mxu0 0
        %1574 = vmatpush1.bf16.msra.mxu0 0
        %1575 = vmatprep.mubr.bf16.mxu0 0
        %1576 = vmatmul.mubr.bf16.gmra.mrb[0].mxu0 %v1183
        %v1577 = vpop.f32.mrb[0].mxu0
        %v1578 = vadd.f32 %v1481, %v1577
        %v1579 = vpop.f32.mrb[0].mxu0
        %v1580 = vpop.f32.mrb[0].mxu0
        %v1581 = vadd.f32 %v1484, %v1580
        %v1582 = vpop.f32.mrb[0].mxu0
        %1583 = vmatprep.mubr.bf16.mxu0 0
        %1584 = vmatmul.mubr.bf16.gmra.mrb[0].mxu0 %v1186
        %v1585 = vpop.f32.mrb[0].mxu0
        %v1586 = vadd.f32 %v1489, %v1585
        %v1587 = vpop.f32.mrb[0].mxu0
        %v1588 = vpop.f32.mrb[0].mxu0
        %v1589 = vadd.f32 %v1492, %v1588
        %v1590 = vpop.f32.mrb[0].mxu0
        %1591 = vmatprep.mubr.bf16.mxu0 0
        %1592 = vmatmul.mubr.bf16.gmra.mrb[0].mxu0 %v1189
        %v1593 = vpop.f32.mrb[0].mxu0
        %v1594 = vadd.f32 %v1497, %v1593
        %v1595 = vpop.f32.mrb[0].mxu0
        %v1596 = vpop.f32.mrb[0].mxu0
        %v1597 = vadd.f32 %v1500, %v1596
        %v1598 = vpop.f32.mrb[0].mxu0
        %1599 = vmatprep.mubr.bf16.mxu0 0
        %1600 = vmatmul.mubr.bf16.gmra.mrb[0].mxu0 %v1192
        %v1601 = vpop.f32.mrb[0].mxu0
        %v1602 = vadd.f32 %v1505, %v1601
        %v1603 = vpop.f32.mrb[0].mxu0
        %v1604 = vpop.f32.mrb[0].mxu0
        %v1605 = vadd.f32 %v1508, %v1604
        %v1606 = vpop.f32.mrb[0].mxu0
        %1607 = vmatprep.mubr.bf16.mxu0 0
        %1608 = vmatmul.mubr.bf16.gmra.mrb[0].mxu0 %v1195
        %v1609 = vpop.f32.mrb[0].mxu0
        %v1610 = vadd.f32 %v1513, %v1609
        %v1611 = vpop.f32.mrb[0].mxu0
        %v1612 = vpop.f32.mrb[0].mxu0
        %v1613 = vadd.f32 %v1516, %v1612
        %v1614 = vpop.f32.mrb[0].mxu0
        %1615 = vmatprep.mubr.bf16.mxu0 0
        %1616 = vmatmul.mubr.bf16.gmra.mrb[0].mxu0 %v1198
        %v1617 = vpop.f32.mrb[0].mxu0
        %v1618 = vadd.f32 %v1521, %v1617
        %v1619 = vpop.f32.mrb[0].mxu0
        %v1620 = vpop.f32.mrb[0].mxu0
        %v1621 = vadd.f32 %v1524, %v1620
        %v1622 = vpop.f32.mrb[0].mxu0
        %1623 = vmatprep.mubr.bf16.mxu0 0
        %1624 = vmatmul.mubr.bf16.gmra.mrb[0].mxu0 %v1201
        %v1625 = vpop.f32.mrb[0].mxu0
        %v1626 = vadd.f32 %v1529, %v1625
        %v1627 = vpop.f32.mrb[0].mxu0
        %v1628 = vpop.f32.mrb[0].mxu0
        %v1629 = vadd.f32 %v1532, %v1628
        %v1630 = vpop.f32.mrb[0].mxu0
        %1631 = vmatprep.mubr.bf16.mxu0 0
        %1632 = vmatmul.mubr.bf16.gmra.mrb[0].mxu0 %v1252
        %v1633 = vpop.f32.mrb[0].mxu0
        %v1634 = vadd.f32 %v1537, %v1633
        %v1635 = vpop.f32.mrb[0].mxu0
        %v1636 = vpop.f32.mrb[0].mxu0
        %v1637 = vadd.f32 %v1540, %v1636
        %v1638 = vpop.f32.mrb[0].mxu0
        %1639 = vdwg.mxu0
        %v1688 = vunpack.c.l.b16 %v1202
        %v1689 = vunpack.c.l.b16 %v1203
        %v1690 = vunpack.c.l.b16 %v1204
        %v1691 = vunpack.c.l.b16 %v1205
        %v1692 = vunpack.c.l.b16 %v1206
        %v1693 = vunpack.c.l.b16 %v1207
        %v1694 = vunpack.c.l.b16 %v1208
        %v1695 = vunpack.c.l.b16 %v1209
        %v1696 = vunpack.c.l.b16 %v1210
        %v1697 = vunpack.c.l.b16 %v1211
        %v1698 = vunpack.c.l.b16 %v1212
        %v1699 = vunpack.c.l.b16 %v1213
        %v1700 = vunpack.c.l.b16 %v1214
        %v1701 = vunpack.c.l.b16 %v1215
        %v1702 = vunpack.c.l.b16 %v1216
        %v1703 = vunpack.c.l.b16 %v1217
        %v1704 = vunpack.c.l.b16 %v1218
        %v1705 = vunpack.c.l.b16 %v1219
        %v1706 = vunpack.c.l.b16 %v1220
        %v1707 = vunpack.c.l.b16 %v1221
        %v1708 = vunpack.c.l.b16 %v1222
        %v1709 = vunpack.c.l.b16 %v1223
        %v1710 = vunpack.c.l.b16 %v1224
        %v1711 = vunpack.c.l.b16 %v1225
        %v1712 = vunpack.c.l.b16 %v1226
        %v1713 = vunpack.c.l.b16 %v1227
        %v1714 = vunpack.c.l.b16 %v1228
        %v1715 = vunpack.c.l.b16 %v1229
        %v1716 = vunpack.c.l.b16 %v1230
        %v1717 = vunpack.c.l.b16 %v1231
        %v1718 = vunpack.c.l.b16 %v1232
        %v1719 = vunpack.c.l.b16 %v1233
        %v1720 = vunpack.c.l.b16 %v1234
        %v1721 = vunpack.c.l.b16 %v1235
        %v1722 = vunpack.c.l.b16 %v1236
        %v1723 = vunpack.c.l.b16 %v1237
        %v1724 = vunpack.c.l.b16 %v1238
        %v1725 = vunpack.c.l.b16 %v1239
        %v1726 = vunpack.c.l.b16 %v1240
        %v1727 = vunpack.c.l.b16 %v1241
        %v1728 = vunpack.c.l.b16 %v1242
        %v1729 = vunpack.c.l.b16 %v1243
        %v1730 = vunpack.c.l.b16 %v1244
        %v1731 = vunpack.c.l.b16 %v1245
        %v1732 = vunpack.c.l.b16 %v1246
        %v1733 = vunpack.c.l.b16 %v1247
        %v1734 = vunpack.c.l.b16 %v1248
        %v1735 = vunpack.c.l.b16 %v1249
        %v1736 = vpack.c.b16 %v1689, %v1688
        %v1737 = vpack.c.b16 %v1691, %v1690
        %v1738 = vpack.c.b16 %v1693, %v1692
        %v1739 = vpack.c.b16 %v1695, %v1694
        %v1740 = vpack.c.b16 %v1697, %v1696
        %v1741 = vpack.c.b16 %v1699, %v1698
        %v1742 = vpack.c.b16 %v1701, %v1700
        %v1743 = vpack.c.b16 %v1703, %v1702
        %v1744 = vpack.c.b16 %v1705, %v1704
        %v1745 = vpack.c.b16 %v1707, %v1706
        %v1746 = vpack.c.b16 %v1709, %v1708
        %v1747 = vpack.c.b16 %v1711, %v1710
        %v1748 = vpack.c.b16 %v1713, %v1712
        %v1749 = vpack.c.b16 %v1715, %v1714
        %v1750 = vpack.c.b16 %v1717, %v1716
        %v1751 = vpack.c.b16 %v1719, %v1718
        %v1752 = vpack.c.b16 %v1721, %v1720
        %v1753 = vpack.c.b16 %v1723, %v1722
        %v1754 = vpack.c.b16 %v1725, %v1724
        %v1755 = vpack.c.b16 %v1727, %v1726
        %v1756 = vpack.c.b16 %v1729, %v1728
        %v1757 = vpack.c.b16 %v1731, %v1730
        %v1758 = vpack.c.b16 %v1733, %v1732
        %v1759 = vpack.c.b16 %v1735, %v1734
        %1784 = vmatprep.subr.bf16.mxu0 0
        %1785 = vmatpush1.bf16.msra.mxu0 %v1736
        %1786 = vmatprep.subr.bf16.mxu0 0
        %1787 = vmatpush1.bf16.msra.mxu0 %v1737
        %1788 = vmatprep.subr.bf16.mxu0 0
        %1789 = vmatpush1.bf16.msra.mxu0 %v1738
        %1790 = vmatprep.subr.bf16.mxu0 0
        %1791 = vmatpush1.bf16.msra.mxu0 %v1739
        %1792 = vmatprep.subr.bf16.mxu0 0
        %1793 = vmatpush1.bf16.msra.mxu0 %v1740
        %1794 = vmatprep.subr.bf16.mxu0 0
        %1795 = vmatpush1.bf16.msra.mxu0 %v1741
        %1796 = vmatprep.subr.bf16.mxu0 0
        %1797 = vmatpush1.bf16.msra.mxu0 %v1742
        %1798 = vmatprep.subr.bf16.mxu0 0
        %1799 = vmatpush1.bf16.msra.mxu0 %v1743
        %1800 = vmatprep.subr.bf16.mxu0 0
        %1801 = vmatpush1.bf16.msra.mxu0 %v1744
        %1802 = vmatprep.subr.bf16.mxu0 0
        %1803 = vmatpush1.bf16.msra.mxu0 %v1745
        %1804 = vmatprep.subr.bf16.mxu0 0
        %1805 = vmatpush1.bf16.msra.mxu0 %v1746
        %1806 = vmatprep.subr.bf16.mxu0 0
        %1807 = vmatpush1.bf16.msra.mxu0 %v1747
        %1808 = vmatprep.subr.bf16.mxu0 0
        %1809 = vmatpush1.bf16.msra.mxu0 %v1748
        %1810 = vmatprep.subr.bf16.mxu0 0
        %1811 = vmatpush1.bf16.msra.mxu0 %v1749
        %1812 = vmatprep.subr.bf16.mxu0 0
        %1813 = vmatpush1.bf16.msra.mxu0 %v1750
        %1814 = vmatprep.subr.bf16.mxu0 0
        %1815 = vmatpush1.bf16.msra.mxu0 %v1751
        %1816 = vmatprep.mubr.bf16.mxu0 %v1179
        %1817 = vmatmul.mubr.bf16.gmra.mrb[0].mxu0 %v1178
        %v1818 = vpop.f32.mrb[0].mxu0
        %v1819 = vadd.f32 %v1578, %v1818
        %v1820 = vpop.f32.mrb[0].mxu0
        %v1821 = vpop.f32.mrb[0].mxu0
        %v1822 = vadd.f32 %v1581, %v1821
        %v1823 = vpop.f32.mrb[0].mxu0
        %1824 = vmatprep.mubr.bf16.mxu0 %v1182
        %1825 = vmatmul.mubr.bf16.gmra.mrb[0].mxu0 %v1181
        %v1826 = vpop.f32.mrb[0].mxu0
        %v1827 = vadd.f32 %v1586, %v1826
        %v1828 = vpop.f32.mrb[0].mxu0
        %v1829 = vpop.f32.mrb[0].mxu0
        %v1830 = vadd.f32 %v1589, %v1829
        %v1831 = vpop.f32.mrb[0].mxu0
        %1832 = vmatprep.mubr.bf16.mxu0 %v1185
        %1833 = vmatmul.mubr.bf16.gmra.mrb[0].mxu0 %v1184
        %v1834 = vpop.f32.mrb[0].mxu0
        %v1835 = vadd.f32 %v1594, %v1834
        %v1836 = vpop.f32.mrb[0].mxu0
        %v1837 = vpop.f32.mrb[0].mxu0
        %v1838 = vadd.f32 %v1597, %v1837
        %v1839 = vpop.f32.mrb[0].mxu0
        %1840 = vmatprep.mubr.bf16.mxu0 %v1188
        %1841 = vmatmul.mubr.bf16.gmra.mrb[0].mxu0 %v1187
        %v1842 = vpop.f32.mrb[0].mxu0
        %v1843 = vadd.f32 %v1602, %v1842
        %v1844 = vpop.f32.mrb[0].mxu0
        %v1845 = vpop.f32.mrb[0].mxu0
        %v1846 = vadd.f32 %v1605, %v1845
        %v1847 = vpop.f32.mrb[0].mxu0
        %1848 = vmatprep.mubr.bf16.mxu0 %v1191
        %1849 = vmatmul.mubr.bf16.gmra.mrb[0].mxu0 %v1190
        %v1850 = vpop.f32.mrb[0].mxu0
        %v1851 = vadd.f32 %v1610, %v1850
        %v1852 = vpop.f32.mrb[0].mxu0
        %v1853 = vpop.f32.mrb[0].mxu0
        %v1854 = vadd.f32 %v1613, %v1853
        %v1855 = vpop.f32.mrb[0].mxu0
        %1856 = vmatprep.mubr.bf16.mxu0 %v1194
        %1857 = vmatmul.mubr.bf16.gmra.mrb[0].mxu0 %v1193
        %v1858 = vpop.f32.mrb[0].mxu0
        %v1859 = vadd.f32 %v1618, %v1858
        %v1860 = vpop.f32.mrb[0].mxu0
        %v1861 = vpop.f32.mrb[0].mxu0
        %v1862 = vadd.f32 %v1621, %v1861
        %v1863 = vpop.f32.mrb[0].mxu0
        %1864 = vmatprep.mubr.bf16.mxu0 %v1197
        %1865 = vmatmul.mubr.bf16.gmra.mrb[0].mxu0 %v1196
        %v1866 = vpop.f32.mrb[0].mxu0
        %v1867 = vadd.f32 %v1626, %v1866
        %v1868 = vpop.f32.mrb[0].mxu0
        %v1869 = vpop.f32.mrb[0].mxu0
        %v1870 = vadd.f32 %v1629, %v1869
        %v1871 = vpop.f32.mrb[0].mxu0
        %1872 = vmatprep.mubr.bf16.mxu0 %v1200
        %1873 = vmatmul.mubr.bf16.gmra.mrb[0].mxu0 %v1199
        %v1874 = vpop.f32.mrb[0].mxu0
        %v1875 = vadd.f32 %v1634, %v1874
        %v1876 = vpop.f32.mrb[0].mxu0
        %v1877 = vpop.f32.mrb[0].mxu0
        %v1878 = vadd.f32 %v1637, %v1877
        %v1879 = vpop.f32.mrb[0].mxu0
        %1880 = vdwg.mxu0
        %1881 = vmatprep.subr.bf16.mxu0 0
        %1882 = vmatpush1.bf16.msra.mxu0 %v1752
        %1883 = vmatprep.subr.bf16.mxu0 0
        %1884 = vmatpush1.bf16.msra.mxu0 %v1753
        %1885 = vmatprep.subr.bf16.mxu0 0
        %1886 = vmatpush1.bf16.msra.mxu0 %v1754
        %1887 = vmatprep.subr.bf16.mxu0 0
        %1888 = vmatpush1.bf16.msra.mxu0 %v1755
        %1889 = vmatprep.subr.bf16.mxu0 0
        %1890 = vmatpush1.bf16.msra.mxu0 %v1756
        %1891 = vmatprep.subr.bf16.mxu0 0
        %1892 = vmatpush1.bf16.msra.mxu0 %v1757
        %1893 = vmatprep.subr.bf16.mxu0 0
        %1894 = vmatpush1.bf16.msra.mxu0 %v1758
        %1895 = vmatprep.subr.bf16.mxu0 0
        %1896 = vmatpush1.bf16.msra.mxu0 %v1759
        %1897 = vmatprep.subr.bf16.mxu0 0
        %1898 = vmatpush1.bf16.msra.mxu0 0
        %1899 = vmatprep.subr.bf16.mxu0 0
        %1900 = vmatpush1.bf16.msra.mxu0 0
        %1901 = vmatprep.subr.bf16.mxu0 0
        %1902 = vmatpush1.bf16.msra.mxu0 0
        %1903 = vmatprep.subr.bf16.mxu0 0
        %1904 = vmatpush1.bf16.msra.mxu0 0
        %1905 = vmatprep.subr.bf16.mxu0 0
        %1906 = vmatpush1.bf16.msra.mxu0 0
        %1907 = vmatprep.subr.bf16.mxu0 0
        %1908 = vmatpush1.bf16.msra.mxu0 0
        %1909 = vmatprep.subr.bf16.mxu0 0
        %1910 = vmatpush1.bf16.msra.mxu0 0
        %1911 = vmatprep.subr.bf16.mxu0 0
        %1912 = vmatpush1.bf16.msra.mxu0 0
        %1913 = vmatprep.mubr.bf16.mxu0 0
        %1914 = vmatmul.mubr.bf16.gmra.mrb[0].mxu0 %v1180
        %v1915 = vpop.f32.mrb[0].mxu0
        %v1916 = vadd.f32 %v1819, %v1915
        %v1917 = vpop.f32.mrb[0].mxu0
        %v1918 = vpop.f32.mrb[0].mxu0
        %v1919 = vadd.f32 %v1822, %v1918
        %v1920 = vpop.f32.mrb[0].mxu0
        %1921 = vmatprep.mubr.bf16.mxu0 0
        %1922 = vmatmul.mubr.bf16.gmra.mrb[0].mxu0 %v1183
        %v1923 = vpop.f32.mrb[0].mxu0
        %v1924 = vadd.f32 %v1827, %v1923
        %v1925 = vpop.f32.mrb[0].mxu0
        %v1926 = vpop.f32.mrb[0].mxu0
        %v1927 = vadd.f32 %v1830, %v1926
        %v1928 = vpop.f32.mrb[0].mxu0
        %1929 = vmatprep.mubr.bf16.mxu0 0
        %1930 = vmatmul.mubr.bf16.gmra.mrb[0].mxu0 %v1186
        %v1931 = vpop.f32.mrb[0].mxu0
        %v1932 = vadd.f32 %v1835, %v1931
        %v1933 = vpop.f32.mrb[0].mxu0
        %v1934 = vpop.f32.mrb[0].mxu0
        %v1935 = vadd.f32 %v1838, %v1934
        %v1936 = vpop.f32.mrb[0].mxu0
        %1937 = vmatprep.mubr.bf16.mxu0 0
        %1938 = vmatmul.mubr.bf16.gmra.mrb[0].mxu0 %v1189
        %v1939 = vpop.f32.mrb[0].mxu0
        %v1940 = vadd.f32 %v1843, %v1939
        %v1941 = vpop.f32.mrb[0].mxu0
        %v1942 = vpop.f32.mrb[0].mxu0
        %v1943 = vadd.f32 %v1846, %v1942
        %v1944 = vpop.f32.mrb[0].mxu0
        %1945 = vmatprep.mubr.bf16.mxu0 0
        %1946 = vmatmul.mubr.bf16.gmra.mrb[0].mxu0 %v1192
        %v1947 = vpop.f32.mrb[0].mxu0
        %v1948 = vadd.f32 %v1851, %v1947
        %v1949 = vpop.f32.mrb[0].mxu0
        %v1950 = vpop.f32.mrb[0].mxu0
        %v1951 = vadd.f32 %v1854, %v1950
        %v1952 = vpop.f32.mrb[0].mxu0
        %1953 = vmatprep.mubr.bf16.mxu0 0
        %1954 = vmatmul.mubr.bf16.gmra.mrb[0].mxu0 %v1195
        %v1955 = vpop.f32.mrb[0].mxu0
        %v1956 = vadd.f32 %v1859, %v1955
        %v1957 = vpop.f32.mrb[0].mxu0
        %v1958 = vpop.f32.mrb[0].mxu0
        %v1959 = vadd.f32 %v1862, %v1958
        %v1960 = vpop.f32.mrb[0].mxu0
        %1961 = vmatprep.mubr.bf16.mxu0 0
        %1962 = vmatmul.mubr.bf16.gmra.mrb[0].mxu0 %v1198
        %v1963 = vpop.f32.mrb[0].mxu0
        %v1964 = vadd.f32 %v1867, %v1963
        %v1965 = vpop.f32.mrb[0].mxu0
        %v1966 = vpop.f32.mrb[0].mxu0
        %v1967 = vadd.f32 %v1870, %v1966
        %v1968 = vpop.f32.mrb[0].mxu0
        %1969 = vmatprep.mubr.bf16.mxu0 0
        %1970 = vmatmul.mubr.bf16.gmra.mrb[0].mxu0 %v1201
        %v1971 = vpop.f32.mrb[0].mxu0
        %v1972 = vadd.f32 %v1875, %v1971
        %v1973 = vpop.f32.mrb[0].mxu0
        %v1974 = vpop.f32.mrb[0].mxu0
        %v1975 = vadd.f32 %v1878, %v1974
        %v1976 = vpop.f32.mrb[0].mxu0
        %1977 = vdwg.mxu0
        %v1978 = vld [vmem:[#allocation4 + $0x30] sm:$0xff]
        %v1979 = vld [vmem:[#allocation4 + $0x38] sm:$0xff]
        %v1980 = vld [vmem:[#allocation4 + $0x40] sm:$0xff]
        %v1981 = vld [vmem:[#allocation4 + $0x48] sm:$0xff]
        %v1982 = vld [vmem:[#allocation4 + $0x50] sm:$0xff]
        %v1983 = vld [vmem:[#allocation4 + $0x58] sm:$0xff]
        %v1984 = vld [vmem:[#allocation4 + $0x60] sm:$0xff]
        %v1985 = vld [vmem:[#allocation4 + $0x68] sm:$0xff]
        %v1986 = vld [vmem:[#allocation4 + $0x70] sm:$0xff]
        %v1987 = vld [vmem:[#allocation4 + $0x78] sm:$0xff]
        %v1988 = vld [vmem:[#allocation4 + $0x80] sm:$0xff]
        %v1989 = vld [vmem:[#allocation4 + $0x88] sm:$0xff]
        %v1990 = vld [vmem:[#allocation4 + $0x90] sm:$0xff]
        %v1991 = vld [vmem:[#allocation4 + $0x98] sm:$0xff]
        %v1992 = vld [vmem:[#allocation4 + $0xa0] sm:$0xff]
        %v1993 = vld [vmem:[#allocation4 + $0xa8] sm:$0xff]
        %v1994 = vld [vmem:[#allocation4 + $0xb0] sm:$0xff]
        %v1995 = vld [vmem:[#allocation4 + $0xb8] sm:$0xff]
        %v1996 = vld [vmem:[#allocation4 + $0xc0] sm:$0xff]
        %v1997 = vld [vmem:[#allocation4 + $0xc8] sm:$0xff]
        %v1998 = vld [vmem:[#allocation4 + $0xd0] sm:$0xff]
        %v1999 = vld [vmem:[#allocation4 + $0xd8] sm:$0xff]
        %v2000 = vld [vmem:[#allocation4 + $0xe0] sm:$0xff]
        %v2001 = vld [vmem:[#allocation4 + $0xe8] sm:$0xff]
        %s2002 = scalar_lea.vmem [#allocation8], 384
        %v2003 = vld [vmem:[%s2002] sm:$0xf]
        %v2004 = vld [vmem:[%s2002 + $0x4] sm:$0xf]
        %v2005 = vld [vmem:[%s2002 + $0x8] sm:$0xf]
        %v2006 = vld [vmem:[%s2002 + $0xc] sm:$0xf]
        %v2007 = vld [vmem:[%s2002 + $0x10] sm:$0xf]
        %v2008 = vld [vmem:[%s2002 + $0x14] sm:$0xf]
        %v2009 = vld [vmem:[%s2002 + $0x18] sm:$0xf]
        %v2010 = vld [vmem:[%s2002 + $0x1c] sm:$0xf]
        %v2011 = vld [vmem:[%s2002 + $0x20] sm:$0xf]
        %v2012 = vld [vmem:[%s2002 + $0x24] sm:$0xf]
        %v2013 = vld [vmem:[%s2002 + $0x28] sm:$0xf]
        %v2014 = vld [vmem:[%s2002 + $0x2c] sm:$0xf]
        %v2015 = vld [vmem:[%s2002 + $0x30] sm:$0xf]
        %v2016 = vld [vmem:[%s2002 + $0x34] sm:$0xf]
        %v2017 = vld [vmem:[%s2002 + $0x38] sm:$0xf]
        %v2018 = vld [vmem:[%s2002 + $0x3c] sm:$0xf]
        %v2019 = vld [vmem:[%s2002 + $0x40] sm:$0xf]
        %v2020 = vld [vmem:[%s2002 + $0x44] sm:$0xf]
        %v2021 = vld [vmem:[%s2002 + $0x48] sm:$0xf]
        %v2022 = vld [vmem:[%s2002 + $0x4c] sm:$0xf]
        %v2023 = vld [vmem:[%s2002 + $0x50] sm:$0xf]
        %v2024 = vld [vmem:[%s2002 + $0x54] sm:$0xf]
        %v2025 = vld [vmem:[%s2002 + $0x58] sm:$0xf]
        %v2026 = vld [vmem:[%s2002 + $0x5c] sm:$0xf]
        %v2027 = vld [vmem:[%s2002 + $0x60] sm:$0xf]
        %v2028 = vld [vmem:[%s2002 + $0x64] sm:$0xf]
        %v2029 = vld [vmem:[%s2002 + $0x68] sm:$0xf]
        %v2030 = vld [vmem:[%s2002 + $0x6c] sm:$0xf]
        %v2031 = vld [vmem:[%s2002 + $0x70] sm:$0xf]
        %v2032 = vld [vmem:[%s2002 + $0x74] sm:$0xf]
        %v2033 = vld [vmem:[%s2002 + $0x78] sm:$0xf]
        %v2034 = vld [vmem:[%s2002 + $0x7c] sm:$0xf]
        %v2035 = vld [vmem:[%s2002 + $0x80] sm:$0xf]
        %v2036 = vld [vmem:[%s2002 + $0x84] sm:$0xf]
        %v2037 = vld [vmem:[%s2002 + $0x88] sm:$0xf]
        %v2038 = vld [vmem:[%s2002 + $0x8c] sm:$0xf]
        %v2039 = vld [vmem:[%s2002 + $0x90] sm:$0xf]
        %v2040 = vld [vmem:[%s2002 + $0x94] sm:$0xf]
        %v2041 = vld [vmem:[%s2002 + $0x98] sm:$0xf]
        %v2042 = vld [vmem:[%s2002 + $0x9c] sm:$0xf]
        %v2043 = vld [vmem:[%s2002 + $0xa0] sm:$0xf]
        %v2044 = vld [vmem:[%s2002 + $0xa4] sm:$0xf]
        %v2045 = vld [vmem:[%s2002 + $0xa8] sm:$0xf]
        %v2046 = vld [vmem:[%s2002 + $0xac] sm:$0xf]
        %v2047 = vld [vmem:[%s2002 + $0xb0] sm:$0xf]
        %v2048 = vld [vmem:[%s2002 + $0xb4] sm:$0xf]
        %v2049 = vld [vmem:[%s2002 + $0xb8] sm:$0xf]
        %v2050 = vld [vmem:[%s2002 + $0xbc] sm:$0xf]
        %v2099 = vunpack.c.l.b16 %v2003
        %v2100 = vunpack.c.l.b16 %v2004
        %v2101 = vunpack.c.l.b16 %v2005
        %v2102 = vunpack.c.l.b16 %v2006
        %v2103 = vunpack.c.l.b16 %v2007
        %v2104 = vunpack.c.l.b16 %v2008
        %v2105 = vunpack.c.l.b16 %v2009
        %v2106 = vunpack.c.l.b16 %v2010
        %v2107 = vunpack.c.l.b16 %v2011
        %v2108 = vunpack.c.l.b16 %v2012
        %v2109 = vunpack.c.l.b16 %v2013
        %v2110 = vunpack.c.l.b16 %v2014
        %v2111 = vunpack.c.l.b16 %v2015
        %v2112 = vunpack.c.l.b16 %v2016
        %v2113 = vunpack.c.l.b16 %v2017
        %v2114 = vunpack.c.l.b16 %v2018
        %v2115 = vunpack.c.l.b16 %v2019
        %v2116 = vunpack.c.l.b16 %v2020
        %v2117 = vunpack.c.l.b16 %v2021
        %v2118 = vunpack.c.l.b16 %v2022
        %v2119 = vunpack.c.l.b16 %v2023
        %v2120 = vunpack.c.l.b16 %v2024
        %v2121 = vunpack.c.l.b16 %v2025
        %v2122 = vunpack.c.l.b16 %v2026
        %v2123 = vunpack.c.l.b16 %v2027
        %v2124 = vunpack.c.l.b16 %v2028
        %v2125 = vunpack.c.l.b16 %v2029
        %v2126 = vunpack.c.l.b16 %v2030
        %v2127 = vunpack.c.l.b16 %v2031
        %v2128 = vunpack.c.l.b16 %v2032
        %v2129 = vunpack.c.l.b16 %v2033
        %v2130 = vunpack.c.l.b16 %v2034
        %v2131 = vunpack.c.l.b16 %v2035
        %v2132 = vunpack.c.l.b16 %v2036
        %v2133 = vunpack.c.l.b16 %v2037
        %v2134 = vunpack.c.l.b16 %v2038
        %v2135 = vunpack.c.l.b16 %v2039
        %v2136 = vunpack.c.l.b16 %v2040
        %v2137 = vunpack.c.l.b16 %v2041
        %v2138 = vunpack.c.l.b16 %v2042
        %v2139 = vunpack.c.l.b16 %v2043
        %v2140 = vunpack.c.l.b16 %v2044
        %v2141 = vunpack.c.l.b16 %v2045
        %v2142 = vunpack.c.l.b16 %v2046
        %v2143 = vunpack.c.l.b16 %v2047
        %v2144 = vunpack.c.l.b16 %v2048
        %v2145 = vunpack.c.l.b16 %v2049
        %v2146 = vunpack.c.l.b16 %v2050
        %v2147 = vpack.c.b16 %v2100, %v2099
        %v2148 = vpack.c.b16 %v2102, %v2101
        %v2149 = vpack.c.b16 %v2104, %v2103
        %v2150 = vpack.c.b16 %v2106, %v2105
        %v2151 = vpack.c.b16 %v2108, %v2107
        %v2152 = vpack.c.b16 %v2110, %v2109
        %v2153 = vpack.c.b16 %v2112, %v2111
        %v2154 = vpack.c.b16 %v2114, %v2113
        %v2155 = vpack.c.b16 %v2116, %v2115
        %v2156 = vpack.c.b16 %v2118, %v2117
        %v2157 = vpack.c.b16 %v2120, %v2119
        %v2158 = vpack.c.b16 %v2122, %v2121
        %v2159 = vpack.c.b16 %v2124, %v2123
        %v2160 = vpack.c.b16 %v2126, %v2125
        %v2161 = vpack.c.b16 %v2128, %v2127
        %v2162 = vpack.c.b16 %v2130, %v2129
        %v2163 = vpack.c.b16 %v2132, %v2131
        %v2164 = vpack.c.b16 %v2134, %v2133
        %v2165 = vpack.c.b16 %v2136, %v2135
        %v2166 = vpack.c.b16 %v2138, %v2137
        %v2167 = vpack.c.b16 %v2140, %v2139
        %v2168 = vpack.c.b16 %v2142, %v2141
        %v2169 = vpack.c.b16 %v2144, %v2143
        %v2170 = vpack.c.b16 %v2146, %v2145
        %2195 = vmatprep.subr.bf16.mxu0 0
        %2196 = vmatpush1.bf16.msra.mxu0 %v2147
        %2197 = vmatprep.subr.bf16.mxu0 0
        %2198 = vmatpush1.bf16.msra.mxu0 %v2148
        %2199 = vmatprep.subr.bf16.mxu0 0
        %2200 = vmatpush1.bf16.msra.mxu0 %v2149
        %2201 = vmatprep.subr.bf16.mxu0 0
        %2202 = vmatpush1.bf16.msra.mxu0 %v2150
        %2203 = vmatprep.subr.bf16.mxu0 0
        %2204 = vmatpush1.bf16.msra.mxu0 %v2151
        %2205 = vmatprep.subr.bf16.mxu0 0
        %2206 = vmatpush1.bf16.msra.mxu0 %v2152
        %2207 = vmatprep.subr.bf16.mxu0 0
        %2208 = vmatpush1.bf16.msra.mxu0 %v2153
        %2209 = vmatprep.subr.bf16.mxu0 0
        %2210 = vmatpush1.bf16.msra.mxu0 %v2154
        %2211 = vmatprep.subr.bf16.mxu0 0
        %2212 = vmatpush1.bf16.msra.mxu0 %v2155
        %2213 = vmatprep.subr.bf16.mxu0 0
        %2214 = vmatpush1.bf16.msra.mxu0 %v2156
        %2215 = vmatprep.subr.bf16.mxu0 0
        %2216 = vmatpush1.bf16.msra.mxu0 %v2157
        %2217 = vmatprep.subr.bf16.mxu0 0
        %2218 = vmatpush1.bf16.msra.mxu0 %v2158
        %2219 = vmatprep.subr.bf16.mxu0 0
        %2220 = vmatpush1.bf16.msra.mxu0 %v2159
        %2221 = vmatprep.subr.bf16.mxu0 0
        %2222 = vmatpush1.bf16.msra.mxu0 %v2160
        %2223 = vmatprep.subr.bf16.mxu0 0
        %2224 = vmatpush1.bf16.msra.mxu0 %v2161
        %2225 = vmatprep.subr.bf16.mxu0 0
        %2226 = vmatpush1.bf16.msra.mxu0 %v2162
        %2227 = vmatprep.mubr.bf16.mxu0 %v1979
        %2228 = vmatmul.mubr.bf16.gmra.mrb[0].mxu0 %v1978
        %v2229 = vpop.f32.mrb[0].mxu0
        %v2230 = vadd.f32 0.0, %v2229
        %v2231 = vpop.f32.mrb[0].mxu0
        %v2232 = vpop.f32.mrb[0].mxu0
        %v2233 = vadd.f32 0.0, %v2232
        %v2234 = vpop.f32.mrb[0].mxu0
        %2235 = vmatprep.mubr.bf16.mxu0 %v1982
        %2236 = vmatmul.mubr.bf16.gmra.mrb[0].mxu0 %v1981
        %v2237 = vpop.f32.mrb[0].mxu0
        %v2238 = vadd.f32 0.0, %v2237
        %v2239 = vpop.f32.mrb[0].mxu0
        %v2240 = vpop.f32.mrb[0].mxu0
        %v2241 = vadd.f32 0.0, %v2240
        %v2242 = vpop.f32.mrb[0].mxu0
        %2243 = vmatprep.mubr.bf16.mxu0 %v1985
        %2244 = vmatmul.mubr.bf16.gmra.mrb[0].mxu0 %v1984
        %v2245 = vpop.f32.mrb[0].mxu0
        %v2246 = vadd.f32 0.0, %v2245
        %v2247 = vpop.f32.mrb[0].mxu0
        %v2248 = vpop.f32.mrb[0].mxu0
        %v2249 = vadd.f32 0.0, %v2248
        %v2250 = vpop.f32.mrb[0].mxu0
        %2251 = vmatprep.mubr.bf16.mxu0 %v1988
        %2252 = vmatmul.mubr.bf16.gmra.mrb[0].mxu0 %v1987
        %v2253 = vpop.f32.mrb[0].mxu0
        %v2254 = vadd.f32 0.0, %v2253
        %v2255 = vpop.f32.mrb[0].mxu0
        %v2256 = vpop.f32.mrb[0].mxu0
        %v2257 = vadd.f32 0.0, %v2256
        %v2258 = vpop.f32.mrb[0].mxu0
        %2259 = vmatprep.mubr.bf16.mxu0 %v1991
        %2260 = vmatmul.mubr.bf16.gmra.mrb[0].mxu0 %v1990
        %v2261 = vpop.f32.mrb[0].mxu0
        %v2262 = vadd.f32 0.0, %v2261
        %v2263 = vpop.f32.mrb[0].mxu0
        %v2264 = vpop.f32.mrb[0].mxu0
        %v2265 = vadd.f32 0.0, %v2264
        %v2266 = vpop.f32.mrb[0].mxu0
        %2267 = vmatprep.mubr.bf16.mxu0 %v1994
        %2268 = vmatmul.mubr.bf16.gmra.mrb[0].mxu0 %v1993
        %v2269 = vpop.f32.mrb[0].mxu0
        %v2270 = vadd.f32 0.0, %v2269
        %v2271 = vpop.f32.mrb[0].mxu0
        %v2272 = vpop.f32.mrb[0].mxu0
        %v2273 = vadd.f32 0.0, %v2272
        %v2274 = vpop.f32.mrb[0].mxu0
        %2275 = vmatprep.mubr.bf16.mxu0 %v1997
        %2276 = vmatmul.mubr.bf16.gmra.mrb[0].mxu0 %v1996
        %v2277 = vpop.f32.mrb[0].mxu0
        %v2278 = vadd.f32 0.0, %v2277
        %v2279 = vpop.f32.mrb[0].mxu0
        %v2280 = vpop.f32.mrb[0].mxu0
        %v2281 = vadd.f32 0.0, %v2280
        %v2282 = vpop.f32.mrb[0].mxu0
        %2283 = vmatprep.mubr.bf16.mxu0 %v2000
        %2284 = vmatmul.mubr.bf16.gmra.mrb[0].mxu0 %v1999
        %v2285 = vpop.f32.mrb[0].mxu0
        %v2286 = vadd.f32 0.0, %v2285
        %v2287 = vpop.f32.mrb[0].mxu0
        %v2288 = vpop.f32.mrb[0].mxu0
        %v2289 = vadd.f32 0.0, %v2288
        %v2290 = vpop.f32.mrb[0].mxu0
        %2291 = vdwg.mxu0
        %2292 = vmatprep.subr.bf16.mxu0 0
        %2293 = vmatpush1.bf16.msra.mxu0 %v2163
        %2294 = vmatprep.subr.bf16.mxu0 0
        %2295 = vmatpush1.bf16.msra.mxu0 %v2164
        %2296 = vmatprep.subr.bf16.mxu0 0
        %2297 = vmatpush1.bf16.msra.mxu0 %v2165
        %2298 = vmatprep.subr.bf16.mxu0 0
        %2299 = vmatpush1.bf16.msra.mxu0 %v2166
        %2300 = vmatprep.subr.bf16.mxu0 0
        %2301 = vmatpush1.bf16.msra.mxu0 %v2167
        %2302 = vmatprep.subr.bf16.mxu0 0
        %2303 = vmatpush1.bf16.msra.mxu0 %v2168
        %2304 = vmatprep.subr.bf16.mxu0 0
        %2305 = vmatpush1.bf16.msra.mxu0 %v2169
        %2306 = vmatprep.subr.bf16.mxu0 0
        %2307 = vmatpush1.bf16.msra.mxu0 %v2170
        %2308 = vmatprep.subr.bf16.mxu0 0
        %2309 = vmatpush1.bf16.msra.mxu0 0
        %2310 = vmatprep.subr.bf16.mxu0 0
        %2311 = vmatpush1.bf16.msra.mxu0 0
        %2312 = vmatprep.subr.bf16.mxu0 0
        %2313 = vmatpush1.bf16.msra.mxu0 0
        %2314 = vmatprep.subr.bf16.mxu0 0
        %2315 = vmatpush1.bf16.msra.mxu0 0
        %2316 = vmatprep.subr.bf16.mxu0 0
        %2317 = vmatpush1.bf16.msra.mxu0 0
        %2318 = vmatprep.subr.bf16.mxu0 0
        %2319 = vmatpush1.bf16.msra.mxu0 0
        %2320 = vmatprep.subr.bf16.mxu0 0
        %2321 = vmatpush1.bf16.msra.mxu0 0
        %2322 = vmatprep.subr.bf16.mxu0 0
        %2323 = vmatpush1.bf16.msra.mxu0 0
        %2324 = vmatprep.mubr.bf16.mxu0 0
        %2325 = vmatmul.mubr.bf16.gmra.mrb[0].mxu0 %v1980
        %v2326 = vpop.f32.mrb[0].mxu0
        %v2327 = vadd.f32 %v2230, %v2326
        %v2328 = vpop.f32.mrb[0].mxu0
        %v2329 = vpop.f32.mrb[0].mxu0
        %v2330 = vadd.f32 %v2233, %v2329
        %v2331 = vpop.f32.mrb[0].mxu0
        %2332 = vmatprep.mubr.bf16.mxu0 0
        %2333 = vmatmul.mubr.bf16.gmra.mrb[0].mxu0 %v1983
        %v2334 = vpop.f32.mrb[0].mxu0
        %v2335 = vadd.f32 %v2238, %v2334
        %v2336 = vpop.f32.mrb[0].mxu0
        %v2337 = vpop.f32.mrb[0].mxu0
        %v2338 = vadd.f32 %v2241, %v2337
        %v2339 = vpop.f32.mrb[0].mxu0
        %2340 = vmatprep.mubr.bf16.mxu0 0
        %2341 = vmatmul.mubr.bf16.gmra.mrb[0].mxu0 %v1986
        %v2342 = vpop.f32.mrb[0].mxu0
        %v2343 = vadd.f32 %v2246, %v2342
        %v2344 = vpop.f32.mrb[0].mxu0
        %v2345 = vpop.f32.mrb[0].mxu0
        %v2346 = vadd.f32 %v2249, %v2345
        %v2347 = vpop.f32.mrb[0].mxu0
        %2348 = vmatprep.mubr.bf16.mxu0 0
        %2349 = vmatmul.mubr.bf16.gmra.mrb[0].mxu0 %v1989
        %v2350 = vpop.f32.mrb[0].mxu0
        %v2351 = vadd.f32 %v2254, %v2350
        %v2352 = vpop.f32.mrb[0].mxu0
        %v2353 = vpop.f32.mrb[0].mxu0
        %v2354 = vadd.f32 %v2257, %v2353
        %v2355 = vpop.f32.mrb[0].mxu0
        %2356 = vmatprep.mubr.bf16.mxu0 0
        %2357 = vmatmul.mubr.bf16.gmra.mrb[0].mxu0 %v1992
        %v2358 = vpop.f32.mrb[0].mxu0
        %v2359 = vadd.f32 %v2262, %v2358
        %v2360 = vpop.f32.mrb[0].mxu0
        %v2361 = vpop.f32.mrb[0].mxu0
        %v2362 = vadd.f32 %v2265, %v2361
        %v2363 = vpop.f32.mrb[0].mxu0
        %2364 = vmatprep.mubr.bf16.mxu0 0
        %2365 = vmatmul.mubr.bf16.gmra.mrb[0].mxu0 %v1995
        %v2366 = vpop.f32.mrb[0].mxu0
        %v2367 = vadd.f32 %v2270, %v2366
        %v2368 = vpop.f32.mrb[0].mxu0
        %v2369 = vpop.f32.mrb[0].mxu0
        %v2370 = vadd.f32 %v2273, %v2369
        %v2371 = vpop.f32.mrb[0].mxu0
        %2372 = vmatprep.mubr.bf16.mxu0 0
        %2373 = vmatmul.mubr.bf16.gmra.mrb[0].mxu0 %v1998
        %v2374 = vpop.f32.mrb[0].mxu0
        %v2375 = vadd.f32 %v2278, %v2374
        %v2376 = vpop.f32.mrb[0].mxu0
        %v2377 = vpop.f32.mrb[0].mxu0
        %v2378 = vadd.f32 %v2281, %v2377
        %v2379 = vpop.f32.mrb[0].mxu0
        %2380 = vmatprep.mubr.bf16.mxu0 0
        %2381 = vmatmul.mubr.bf16.gmra.mrb[0].mxu0 %v2001
        %v2382 = vpop.f32.mrb[0].mxu0
        %v2383 = vadd.f32 %v2286, %v2382
        %v2384 = vpop.f32.mrb[0].mxu0
        %v2385 = vpop.f32.mrb[0].mxu0
        %v2386 = vadd.f32 %v2289, %v2385
        %v2387 = vpop.f32.mrb[0].mxu0
        %2388 = vdwg.mxu0
        %v2389 = vadd.f32 %v1916, %v2327
        %v2390 = vadd.f32 %v1919, %v2330
        %v2391 = vadd.f32 %v1924, %v2335
        %v2392 = vadd.f32 %v1927, %v2338
        %v2393 = vadd.f32 %v1932, %v2343
        %v2394 = vadd.f32 %v1935, %v2346
        %v2395 = vadd.f32 %v1940, %v2351
        %v2396 = vadd.f32 %v1943, %v2354
        %v2397 = vadd.f32 %v1948, %v2359
        %v2398 = vadd.f32 %v1951, %v2362
        %v2399 = vadd.f32 %v1956, %v2367
        %v2400 = vadd.f32 %v1959, %v2370
        %v2401 = vadd.f32 %v1964, %v2375
        %v2402 = vadd.f32 %v1967, %v2378
        %v2403 = vadd.f32 %v1972, %v2383
        %v2404 = vadd.f32 %v1975, %v2386
        %v2405 = vld [vmem:[%s4] sm:$0x1]
        %v2407 = vlaneseq
        %v2408 = vshrl.u32 %v2407, 7
        %v2409 = vsub.s32 0, %v2408
        %v2410 = vrot.slane %v2405, %v2409
        %v2412 = vadd.f32 %v2389, %v2410
        %v2413 = vadd.f32 %v2390, %v2410
        %v2414 = vadd.f32 %v2391, %v2410
        %v2415 = vadd.f32 %v2392, %v2410
        %v2416 = vadd.f32 %v2393, %v2410
        %v2417 = vadd.f32 %v2394, %v2410
        %v2418 = vadd.f32 %v2395, %v2410
        %v2419 = vadd.f32 %v2396, %v2410
        %v2420 = vadd.f32 %v2397, %v2410
        %v2421 = vadd.f32 %v2398, %v2410
        %v2422 = vadd.f32 %v2399, %v2410
        %v2423 = vadd.f32 %v2400, %v2410
        %v2424 = vadd.f32 %v2401, %v2410
        %v2425 = vadd.f32 %v2402, %v2410
        %v2426 = vadd.f32 %v2403, %v2410
        %v2427 = vadd.f32 %v2404, %v2410
        %v2428 = vxor.u32 %v2412, 2147483648
        %v2429 = vxor.u32 %v2413, 2147483648
        %v2430 = vxor.u32 %v2414, 2147483648
        %v2431 = vxor.u32 %v2415, 2147483648
        %v2432 = vxor.u32 %v2416, 2147483648
        %v2433 = vxor.u32 %v2417, 2147483648
        %v2434 = vxor.u32 %v2418, 2147483648
        %v2435 = vxor.u32 %v2419, 2147483648
        %v2436 = vxor.u32 %v2420, 2147483648
        %v2437 = vxor.u32 %v2421, 2147483648
        %v2438 = vxor.u32 %v2422, 2147483648
        %v2439 = vxor.u32 %v2423, 2147483648
        %v2440 = vxor.u32 %v2424, 2147483648
        %v2441 = vxor.u32 %v2425, 2147483648
        %v2442 = vxor.u32 %v2426, 2147483648
        %v2443 = vxor.u32 %v2427, 2147483648
        %v2444 = vmul.f32 %v2428, 1.442695
        %v2445 = vpow.pop %v2444
        %v2446 = vmul.f32 %v2429, 1.442695
        %v2447 = vpow.pop %v2446
        %v2448 = vmul.f32 %v2430, 1.442695
        %v2449 = vpow.pop %v2448
        %v2450 = vmul.f32 %v2431, 1.442695
        %v2451 = vpow.pop %v2450
        %v2452 = vmul.f32 %v2432, 1.442695
        %v2453 = vpow.pop %v2452
        %v2454 = vmul.f32 %v2433, 1.442695
        %v2455 = vpow.pop %v2454
        %v2456 = vmul.f32 %v2434, 1.442695
        %v2457 = vpow.pop %v2456
        %v2458 = vmul.f32 %v2435, 1.442695
        %v2459 = vpow.pop %v2458
        %v2460 = vmul.f32 %v2436, 1.442695
        %v2461 = vpow.pop %v2460
        %v2462 = vmul.f32 %v2437, 1.442695
        %v2463 = vpow.pop %v2462
        %v2464 = vmul.f32 %v2438, 1.442695
        %v2465 = vpow.pop %v2464
        %v2466 = vmul.f32 %v2439, 1.442695
        %v2467 = vpow.pop %v2466
        %v2468 = vmul.f32 %v2440, 1.442695
        %v2469 = vpow.pop %v2468
        %v2470 = vmul.f32 %v2441, 1.442695
        %v2471 = vpow.pop %v2470
        %v2472 = vmul.f32 %v2442, 1.442695
        %v2473 = vpow.pop %v2472
        %v2474 = vmul.f32 %v2443, 1.442695
        %v2475 = vpow.pop %v2474
        %v2476 = vadd.f32 %v2445, 1.0
        %v2477 = vadd.f32 %v2447, 1.0
        %v2478 = vadd.f32 %v2449, 1.0
        %v2479 = vadd.f32 %v2451, 1.0
        %v2480 = vadd.f32 %v2453, 1.0
        %v2481 = vadd.f32 %v2455, 1.0
        %v2482 = vadd.f32 %v2457, 1.0
        %v2483 = vadd.f32 %v2459, 1.0
        %v2484 = vadd.f32 %v2461, 1.0
        %v2485 = vadd.f32 %v2463, 1.0
        %v2486 = vadd.f32 %v2465, 1.0
        %v2487 = vadd.f32 %v2467, 1.0
        %v2488 = vadd.f32 %v2469, 1.0
        %v2489 = vadd.f32 %v2471, 1.0
        %v2490 = vadd.f32 %v2473, 1.0
        %v2491 = vadd.f32 %v2475, 1.0
        %v2492 = vrcp.pop %v2476
        %v2493 = vmul.f32 1.0, %v2492
        %v2494 = vrcp.pop %v2477
        %v2495 = vmul.f32 1.0, %v2494
        %v2496 = vrcp.pop %v2478
        %v2497 = vmul.f32 1.0, %v2496
        %v2498 = vrcp.pop %v2479
        %v2499 = vmul.f32 1.0, %v2498
        %v2500 = vrcp.pop %v2480
        %v2501 = vmul.f32 1.0, %v2500
        %v2502 = vrcp.pop %v2481
        %v2503 = vmul.f32 1.0, %v2502
        %v2504 = vrcp.pop %v2482
        %v2505 = vmul.f32 1.0, %v2504
        %v2506 = vrcp.pop %v2483
        %v2507 = vmul.f32 1.0, %v2506
        %v2508 = vrcp.pop %v2484
        %v2509 = vmul.f32 1.0, %v2508
        %v2510 = vrcp.pop %v2485
        %v2511 = vmul.f32 1.0, %v2510
        %v2512 = vrcp.pop %v2486
        %v2513 = vmul.f32 1.0, %v2512
        %v2514 = vrcp.pop %v2487
        %v2515 = vmul.f32 1.0, %v2514
        %v2516 = vrcp.pop %v2488
        %v2517 = vmul.f32 1.0, %v2516
        %v2518 = vrcp.pop %v2489
        %v2519 = vmul.f32 1.0, %v2518
        %v2520 = vrcp.pop %v2490
        %v2521 = vmul.f32 1.0, %v2520
        %v2522 = vrcp.pop %v2491
        %v2523 = vmul.f32 1.0, %v2522
        %v2524 = vmul.f32 %v2412, %v2493
        %v2525 = vmul.f32 %v2413, %v2495
        %v2526 = vmul.f32 %v2414, %v2497
        %v2527 = vmul.f32 %v2415, %v2499
        %v2528 = vmul.f32 %v2416, %v2501
        %v2529 = vmul.f32 %v2417, %v2503
        %v2530 = vmul.f32 %v2418, %v2505
        %v2531 = vmul.f32 %v2419, %v2507
        %v2532 = vmul.f32 %v2420, %v2509
        %v2533 = vmul.f32 %v2421, %v2511
        %v2534 = vmul.f32 %v2422, %v2513
        %v2535 = vmul.f32 %v2423, %v2515
        %v2536 = vmul.f32 %v2424, %v2517
        %v2537 = vmul.f32 %v2425, %v2519
        %v2538 = vmul.f32 %v2426, %v2521
        %v2539 = vmul.f32 %v2427, %v2523
        %v2540 = vld [vmem:[#allocation2 + $0x10] sm:$0xff]
        %v2541 = vld [vmem:[#allocation2 + $0x18] sm:$0xff]
        %v2542 = vld [vmem:[#allocation2 + $0x20] sm:$0xff]
        %v2543 = vld [vmem:[#allocation2 + $0x28] sm:$0xff]
        %v2544 = vld [vmem:[#allocation2 + $0x30] sm:$0xff]
        %v2545 = vld [vmem:[#allocation2 + $0x38] sm:$0xff]
        %v2546 = vld [vmem:[#allocation2 + $0x40] sm:$0xff]
        %v2547 = vld [vmem:[#allocation2 + $0x48] sm:$0xff]
        %v2548 = vld [vmem:[#allocation2 + $0x50] sm:$0xff]
        %v2549 = vld [vmem:[#allocation2 + $0x58] sm:$0xff]
        %v2550 = vld [vmem:[#allocation2 + $0x60] sm:$0xff]
        %v2551 = vld [vmem:[#allocation2 + $0x68] sm:$0xff]
        %v2552 = vld [vmem:[#allocation2 + $0x70] sm:$0xff]
        %v2553 = vld [vmem:[#allocation2 + $0x78] sm:$0xff]
        %v2554 = vld [vmem:[#allocation2 + $0x80] sm:$0xff]
        %v2555 = vld [vmem:[#allocation2 + $0x88] sm:$0xff]
        %v2556 = vadd.f32 %v2524, %v2540
        %v2557 = vadd.f32 %v2525, %v2541
        %v2558 = vadd.f32 %v2526, %v2542
        %v2559 = vadd.f32 %v2527, %v2543
        %v2560 = vadd.f32 %v2528, %v2544
        %v2561 = vadd.f32 %v2529, %v2545
        %v2562 = vadd.f32 %v2530, %v2546
        %v2563 = vadd.f32 %v2531, %v2547
        %v2564 = vadd.f32 %v2532, %v2548
        %v2565 = vadd.f32 %v2533, %v2549
        %v2566 = vadd.f32 %v2534, %v2550
        %v2567 = vadd.f32 %v2535, %v2551
        %v2568 = vadd.f32 %v2536, %v2552
        %v2569 = vadd.f32 %v2537, %v2553
        %v2570 = vadd.f32 %v2538, %v2554
        %v2571 = vadd.f32 %v2539, %v2555
        %2572 = vst [vmem:[%s222] sm:$0xff] %v2556
        %2573 = vst [vmem:[%s222 + $0x8] sm:$0xff] %v2557
        %2574 = vst [vmem:[%s222 + $0x10] sm:$0xff] %v2558
        %2575 = vst [vmem:[%s222 + $0x18] sm:$0xff] %v2559
        %2576 = vst [vmem:[%s222 + $0x20] sm:$0xff] %v2560
        %2577 = vst [vmem:[%s222 + $0x28] sm:$0xff] %v2561
        %2578 = vst [vmem:[%s222 + $0x30] sm:$0xff] %v2562
        %2579 = vst [vmem:[%s222 + $0x38] sm:$0xff] %v2563
        %2580 = vst [vmem:[%s222 + $0x40] sm:$0xff] %v2564
        %2581 = vst [vmem:[%s222 + $0x48] sm:$0xff] %v2565
        %2582 = vst [vmem:[%s222 + $0x50] sm:$0xff] %v2566
        %2583 = vst [vmem:[%s222 + $0x58] sm:$0xff] %v2567
        %2584 = vst [vmem:[%s222 + $0x60] sm:$0xff] %v2568
        %2585 = vst [vmem:[%s222 + $0x68] sm:$0xff] %v2569
        %2586 = vst [vmem:[%s222 + $0x70] sm:$0xff] %v2570
        %2587 = vst [vmem:[%s222 + $0x78] sm:$0xff] %v2571
        %s2588 = sand.u32 %s129, 1
        %s2589 = scalar_lea.sflag [#allocation7], %s2588
        %s2590 = sand.u32 %s129, 1
        %s2591 = smul.addr %s2590, 128
        %s2592 = scalar_lea.vmem [#allocation10], %s2591
        // Predicated region
        $region57: #{tpu_custom_call.1} parent=35 // pred_check
          %p2593 = pneg %p139
        $region58: #{tpu_custom_call.1} parent=35 // pred_check_branch
          %2595 = sbr.rel (%p2593) target = $region60
        $region59: #{tpu_custom_call.1} parent=35 // pred_region
          %s2596 = smul.u32 %s25, 2
          %s2597 = sadd.s32 %s2596, %s26
          %s2598 = smul.u32 16, %s2597
          %s2600 = ssub.s32 2048, 2048
          %2601 = vsyncadd %s2589, %s2600
          %s2602 = smul.addr %s2598, 128
          %s2603 = scalar_lea.hbm %s5, %s2602
          %s2604 = sshll.u32 %s2592, 4
          %s2605 = int_to_ptr.vmem [resolvable:$true] %s2604
          %2610 = dma.vmem_to_hbm [thread:$0]  %s2605, 2048, %s2603, %s2589, 128, 128, 8
        $region60: #{tpu_custom_call.1} parent=35 // pred_fallthru
          _
      $region36: #{tpu_custom_call.1} parent=5 // pred_fallthru
        _
      %p2611 = scmp.le.s32.totalorder 2, %s16
      // Predicated region
      $region61: #{tpu_custom_call.1} parent=5 // pred_check
        %p2612 = pneg %p2611
      $region62: #{tpu_custom_call.1} parent=5 // pred_check_branch
        %2614 = sbr.rel (%p2612) target = $region64
      $region63: #{tpu_custom_call.1} parent=5 // pred_region
        %s2615 = ssub.s32 %s16, 2
        // Predicated region
        $region65: #{tpu_custom_call.1} parent=63 // pred_check
          %p2616 = pneg %p145
        $region66: #{tpu_custom_call.1} parent=63 // pred_check_branch
          %2618 = sbr.rel (%p2616) target = $region68
        $region67: #{tpu_custom_call.1} parent=63 // pred_region
          %s2619 = sand.u32 %s130, 1
          %s2620 = scalar_lea.sflag [#allocation7], %s2619
          %s2621 = sand.u32 %s130, 1
          %s2622 = smul.addr %s2621, 128
          %s2623 = scalar_lea.vmem [#allocation10], %s2622
          %2624 = dma.done %s2620, 2048
        $region68: #{tpu_custom_call.1} parent=63 // pred_fallthru
          _
      $region64: #{tpu_custom_call.1} parent=5 // pred_fallthru
        _
    $region6: #{tpu_custom_call.1} parent=1 // loop_footer
      %s20 = sadd.s32 1, %s16
    $region7: #{tpu_custom_call.1} parent=1 // loop_footer_branch
      %15 = sbr.rel target = $region3
    $region8: #{tpu_custom_call.1} parent=1 // loop_exit
      _
    %2625 = vsyncpa [#allocation6], 1
    %s2626 = scalar_lea.sflag [#allocation6], 1
    %2627 = vsyncpa %s2626, 1
    %2628 = vsyncpa [#allocation9], 1
    %2629 = vsyncpa [#allocation7], 1
    %s2630 = scalar_lea.sflag [#allocation7], 1
    %2631 = vsyncpa %s2630, 1
  %2632 = vsyncmov [#allocation3]
  %s2633 = vpop.sfrf %2632
  %p2634 = scmp.eq.s32.totalorder %s2633, 0
  %p2635 = pneg %p2634
  %2637 = shalt.err (%p2635)

</llo_original>
